<compile_context>
chip_gen: v7x
topology: tpu7x:2x2x1
jax: 0.10.0
libtpu: 0.0.40
codegen_flags: <defaults>
</compile_context>

<pallas_src>
import functools

import jax
import jax.numpy as jnp
from jax.experimental import pallas as pl
from jax.experimental.pallas import tpu as pltpu

# ----------------------------- config (stand-in for CFG) ---------------------
TEMPERATURE = 1.0                          # CFG.temperature
IMG_EMBED   = 128                          # CFG.image_embedding (lane-dense)
PROJ_DIM    = 128                          # CFG.projection_dim  (lane-dense)
PATCH       = 8                            # synthetic conv-stem patch size
CPP         = 3 * PATCH * PATCH            # 192 raw patch features
CPP_PAD     = ((CPP + 127) // 128) * 128   # 256: lane / MXU-K aligned
LN_EPS      = 1e-5                         # torch.nn.LayerNorm default eps


def _gelu_tanh(x):
    # TODO(synk): nn.GELU() default is exact erf-GELU; tanh approximation used
    # for a Mosaic-safe elementwise lowering (matches to ~1e-3).
    return 0.5 * x * (1.0 + jnp.tanh(0.7978845608028654 * (x + 0.044715 * x * x * x)))


def _scalar_sum(a):
    # Full reduce to a (1, 1) tile: lane reduce first, then tiny sublane reduce.
    return jnp.sum(jnp.sum(a, axis=-1, keepdims=True), axis=0, keepdims=True)


# ----------------------------- fused forward kernel --------------------------
def clip_fused_kernel(patches_ref, enc_w_ref, enc_b_ref,
                      w1_ref, b1_ref, w2_ref, b2_ref, g_ref, beta_ref,
                      o_ref, feats_sc, *,
                      temperature, batch, imgs_per_block, patches_per_img):
    blk = pl.program_id(0)
    pp = patches_per_img

    # ---- encoder on this block of images: bf16 MXU matmul, f32 accumulate ----
    x = patches_ref[...]                                         # (TI*Pp, Cpp_pad) bf16
    h = jnp.dot(x, enc_w_ref[...], preferred_element_type=jnp.float32)
    h = jnp.maximum(h + enc_b_ref[...], 0.0)                     # stem ReLU, (TI*Pp, E) f32

    # ---- per-image global average pool: f32 sublane reduce per image ---------
    # (review: "(1, Pp) pool per image"; 1/Pp kept in f32, not bf16)
    parts = [jnp.sum(h[j * pp:(j + 1) * pp], axis=0, keepdims=True)
             for j in range(imgs_per_block)]
    feats_blk = jnp.concatenate(parts, axis=0) * (1.0 / pp)      # (TI, E) f32

    row0 = blk * imgs_per_block
    if imgs_per_block % 8 == 0:                                  # aligned feats store
        row0 = pl.multiple_of(row0, 8)
    feats_sc[pl.ds(row0, imgs_per_block), :] = feats_blk

    # ---- projection head + CLIP loss epilogue on the last grid step ----------
    @pl.when(blk == pl.num_programs(0) - 1)
    def _epilogue():
        feats = feats_sc[...]                                    # (2B, E) f32
        projected = (jnp.dot(feats.astype(jnp.bfloat16), w1_ref[...],
                             preferred_element_type=jnp.float32) + b1_ref[...])
        act = _gelu_tanh(projected)
        fc = (jnp.dot(act.astype(jnp.bfloat16), w2_ref[...],
                      preferred_element_type=jnp.float32) + b2_ref[...])
        y = fc + projected                                       # Dropout: identity (eval)
        mu = jnp.mean(y, axis=-1, keepdims=True)
        var = jnp.mean((y - mu) * (y - mu), axis=-1, keepdims=True)   # biased (torch LN)
        emb = (y - mu) * jax.lax.rsqrt(var + LN_EPS) * g_ref[...] + beta_ref[...]

        s16 = emb[:batch].astype(jnp.bfloat16)                   # sketch embeddings (B, P)
        i16 = emb[batch:].astype(jnp.bfloat16)                   # icon embeddings   (B, P)
        dn = (((1,), (1,)), ((), ()))                            # a @ b.T without transpose
        logits = jax.lax.dot_general(i16, s16, dn,
                                     preferred_element_type=jnp.float32) / temperature
        sketch_sim = jax.lax.dot_general(s16, s16, dn, preferred_element_type=jnp.float32)
        icon_sim = jax.lax.dot_general(i16, i16, dn, preferred_element_type=jnp.float32)

        tgt = (sketch_sim + icon_sim) * (0.5 * temperature)
        tgt = jnp.exp(tgt - jnp.max(tgt, axis=-1, keepdims=True))
        targets = tgt / jnp.sum(tgt, axis=-1, keepdims=True)     # softmax(dim=-1), f32

        # row LSE (lane reduce) and column LSE directly along axis 0 (sublane /
        # XLU reduce) -- no second matmul / transpose needed.
        row_m = jnp.max(logits, axis=-1, keepdims=True)
        row_lse = row_m + jnp.log(jnp.sum(jnp.exp(logits - row_m), axis=-1, keepdims=True))
        col_m = jnp.max(logits, axis=0, keepdims=True)
        col_lse = col_m + jnp.log(jnp.sum(jnp.exp(logits - col_m), axis=0, keepdims=True))

        # icon_loss_i   = -sum_j t[i,j]*(logits[i,j] - row_lse[i])
        # sketch_loss_j = -sum_i t[i,j]*(logits[i,j] - col_lse[j])
        # loss = (-2*sum(t*l) + sum(row_lse) + sum(colsum(t)*col_lse)) / (2B)
        tl_sum = _scalar_sum(targets * logits)
        row_term = _scalar_sum(row_lse)
        col_term = _scalar_sum(jnp.sum(targets, axis=0, keepdims=True) * col_lse)
        o_ref[...] = (-2.0 * tl_sum + row_term + col_term) / (2.0 * batch)


# ----------------------------- glue: params, patchify, forward ---------------
def init_params(key):
    ks = jax.random.split(key, 6)
    return {
        "enc_w":   jax.random.normal(ks[0], (CPP_PAD, IMG_EMBED), jnp.float32) * 0.02,
        "enc_b":   jax.random.normal(ks[1], (1, IMG_EMBED), jnp.float32) * 0.01,
        "proj_w1": jax.random.normal(ks[2], (IMG_EMBED, PROJ_DIM), jnp.float32) * 0.02,
        "proj_b1": jax.random.normal(ks[3], (1, PROJ_DIM), jnp.float32) * 0.01,
        "proj_w2": jax.random.normal(ks[4], (PROJ_DIM, PROJ_DIM), jnp.float32) * 0.02,
        "proj_b2": jax.random.normal(ks[5], (1, PROJ_DIM), jnp.float32) * 0.01,
        "ln_g":    jnp.ones((1, PROJ_DIM), jnp.float32),
        "ln_b":    jnp.zeros((1, PROJ_DIM), jnp.float32),
    }


def patchify(x, patch):
    # x: (B, C, H, W) NCHW -> (B, num_patches, C*patch*patch)
    B, C, H, W = x.shape
    x = x.reshape(B, C, H // patch, patch, W // patch, patch)
    x = x.transpose(0, 2, 4, 1, 3, 5)
    return x.reshape(B, (H // patch) * (W // patch), C * patch * patch)


def _pick_imgs_per_block(total_imgs, patches_per_img, max_block_rows):
    # Prefer divisors of 2B that are multiples of 8 (aligned feats stores) and
    # keep the patch block under the row budget; fall back to any divisor.
    fits = [d for d in range(1, total_imgs + 1)
            if total_imgs % d == 0 and d * patches_per_img <= max_block_rows]
    if not fits:
        return 1
    aligned = [d for d in fits if d % 8 == 0]
    return max(aligned) if aligned else max(fits)


def clip_forward(batch, params, temperature=TEMPERATURE, max_block_rows=2048):
    sk = patchify(batch["sketch"], PATCH)                        # (B, Pp, Cpp)
    ic = patchify(batch["icon"], PATCH)
    B, Pp, Cpp = sk.shape
    two_b = 2 * B

    # Stack sketch + icon so one gridded matmul encodes everything; zero-pad K
    # to 256 so no implicit lane padding is DMA'd; bf16 halves the patch DMA.
    patches = jnp.concatenate([sk, ic], axis=0).reshape(two_b * Pp, Cpp)
    if CPP_PAD != Cpp:
        patches = jnp.pad(patches, ((0, 0), (0, CPP_PAD - Cpp)))
    patches = patches.astype(jnp.bfloat16)

    enc_w = params["enc_w"].astype(jnp.bfloat16)
    w1 = params["proj_w1"].astype(jnp.bfloat16)
    w2 = params["proj_w2"].astype(jnp.bfloat16)

    ti = _pick_imgs_per_block(two_b, Pp, max_block_rows)         # images per grid block
    nblk = two_b // ti
    block_rows = ti * Pp

    rows = two_b * Pp
    flops = 2 * (rows * CPP_PAD * IMG_EMBED                      # encoder matmul
                 + two_b * IMG_EMBED * PROJ_DIM                  # projection
                 + two_b * PROJ_DIM * PROJ_DIM                   # fc
                 + 3 * B * B * PROJ_DIM)                         # three (B,P)x(P,B) dots
    bytes_accessed = (2 * (patches.size + enc_w.size + w1.size + w2.size)
                      + 4 * (params["enc_b"].size + params["proj_b1"].size
                             + params["proj_b2"].size + params["ln_g"].size
                             + params["ln_b"].size + 1))
    transcendentals = two_b * PROJ_DIM + 4 * B * B               # tanh + exp/log (ballpark)

    # VMEM budget: double-buffered bf16 patch block + resident weights + feats
    # scratch + epilogue slack.  Capped at 48 MiB so it also fits v7x (64 MiB).
    vmem_need = (2 * block_rows * CPP_PAD * 2
                 + 2 * (enc_w.size + w1.size + w2.size)
                 + 4 * two_b * IMG_EMBED
                 + (4 << 20))
    compiler_params = pltpu.CompilerParams(
        dimension_semantics=("arbitrary",),   # feats scratch + last-step epilogue
        vmem_limit_bytes=int(min(max(vmem_need, 16 << 20), 48 << 20)))

    kernel = functools.partial(clip_fused_kernel,
                               temperature=float(temperature), batch=B,
                               imgs_per_block=ti, patches_per_img=Pp)

    out = pl.pallas_call(
        kernel,
        out_shape=jax.ShapeDtypeStruct((1, 1), jnp.float32),
        grid=(nblk,),
        in_specs=[
            pl.BlockSpec((block_rows, CPP_PAD), lambda i: (i, 0)),     # patches (streamed)
            pl.BlockSpec((CPP_PAD, IMG_EMBED), lambda i: (0, 0)),      # enc_w (resident)
            pl.BlockSpec((1, IMG_EMBED), lambda i: (0, 0)),            # enc_b
            pl.BlockSpec((IMG_EMBED, PROJ_DIM), lambda i: (0, 0)),     # w1
            pl.BlockSpec((1, PROJ_DIM), lambda i: (0, 0)),             # b1
            pl.BlockSpec((PROJ_DIM, PROJ_DIM), lambda i: (0, 0)),      # w2
            pl.BlockSpec((1, PROJ_DIM), lambda i: (0, 0)),             # b2
            pl.BlockSpec((1, PROJ_DIM), lambda i: (0, 0)),             # ln gamma
            pl.BlockSpec((1, PROJ_DIM), lambda i: (0, 0)),             # ln beta
        ],
        out_specs=pl.BlockSpec((1, 1), lambda i: (0, 0)),
        scratch_shapes=[pltpu.VMEM((two_b, IMG_EMBED), jnp.float32)],  # pooled feats
        compiler_params=compiler_params,
        cost_estimate=pl.CostEstimate(flops=int(flops),
                                      transcendentals=int(transcendentals),
                                      bytes_accessed=int(bytes_accessed)),
    )(patches, enc_w, params["enc_b"],
      w1, params["proj_b1"], w2, params["proj_b2"],
      params["ln_g"], params["ln_b"])
    return out[0, 0]


if __name__ == "__main__":
    key = jax.random.PRNGKey(0)
    k_params, k_sketch, k_icon = jax.random.split(key, 3)
    params = init_params(k_params)

    B, C, H, W = 8, 3, 16, 16
    batch = {
        "sketch": jax.random.normal(k_sketch, (B, C, H, W), jnp.float32),
        "icon":   jax.random.normal(k_icon, (B, C, H, W), jnp.float32),
    }

    # max_block_rows=32 -> 8 images / block, 2 grid steps: exercises the
    # pipelined encoder grid, feats scratch, and last-step epilogue at toy size.
    loss = clip_forward(batch, params, max_block_rows=32)
    jax.block_until_ready(loss)
    print("KERNEL_OK")
</pallas_src>

<mosaic_0001>
module attributes {stable_mosaic.version = 11 : i64} {
  func.func @clip_fused_kernel(%arg0: i32, %arg1: memref<32x256xbf16, #tpu.memory_space<vmem>>, %arg2: memref<256x128xbf16, #tpu.memory_space<vmem>>, %arg3: memref<1x128xf32, #tpu.memory_space<vmem>>, %arg4: memref<128x128xbf16, #tpu.memory_space<vmem>>, %arg5: memref<1x128xf32, #tpu.memory_space<vmem>>, %arg6: memref<128x128xbf16, #tpu.memory_space<vmem>>, %arg7: memref<1x128xf32, #tpu.memory_space<vmem>>, %arg8: memref<1x128xf32, #tpu.memory_space<vmem>>, %arg9: memref<1x128xf32, #tpu.memory_space<vmem>>, %arg10: memref<1x1xf32, #tpu.memory_space<vmem>>, %arg11: memref<16x128xf32, #tpu.memory_space<vmem>>) attributes {dimension_semantics = [#tpu.dimension_semantics<arbitrary>], iteration_bounds = array<i64: 2>, scalar_prefetch = 0 : i64, scratch_operands = 1 : i64, tpu.core_type = #tpu.core_type<tc>, window_params = [{transform_indices = @transform_0, window_bounds = array<i64: 32, 256>}, {pipeline_mode = #tpu.pipeline_mode<synchronous>, transform_indices = @transform_1, window_bounds = array<i64: 256, 128>}, {pipeline_mode = #tpu.pipeline_mode<synchronous>, transform_indices = @transform_2, window_bounds = array<i64: 1, 128>}, {pipeline_mode = #tpu.pipeline_mode<synchronous>, transform_indices = @transform_3, window_bounds = array<i64: 128, 128>}, {pipeline_mode = #tpu.pipeline_mode<synchronous>, transform_indices = @transform_4, window_bounds = array<i64: 1, 128>}, {pipeline_mode = #tpu.pipeline_mode<synchronous>, transform_indices = @transform_5, window_bounds = array<i64: 128, 128>}, {pipeline_mode = #tpu.pipeline_mode<synchronous>, transform_indices = @transform_6, window_bounds = array<i64: 1, 128>}, {pipeline_mode = #tpu.pipeline_mode<synchronous>, transform_indices = @transform_7, window_bounds = array<i64: 1, 128>}, {pipeline_mode = #tpu.pipeline_mode<synchronous>, transform_indices = @transform_8, window_bounds = array<i64: 1, 128>}, {pipeline_mode = #tpu.pipeline_mode<synchronous>, transform_indices = @transform_9, window_bounds = array<i64: 1, 1>}]} {
    %c0 = arith.constant 0 : index
    %c0_0 = arith.constant 0 : index
    %0 = vector.load %arg1[%c0, %c0_0] : memref<32x256xbf16, #tpu.memory_space<vmem>>, vector<32x256xbf16>
    %c0_1 = arith.constant 0 : index
    %c0_2 = arith.constant 0 : index
    %1 = vector.load %arg2[%c0_1, %c0_2] : memref<256x128xbf16, #tpu.memory_space<vmem>>, vector<256x128xbf16>
    %cst = arith.constant dense<0.000000e+00> : vector<32x128xf32>
    %2 = tpu.matmul %0, %1, %cst {dimension_numbers = #tpu.dot_dimension_numbers<[1], [0], [0], [1], [0, 0, 1, 1], [], []>} : vector<32x256xbf16>, vector<256x128xbf16>, vector<32x128xf32> -> vector<32x128xf32>
    %c0_3 = arith.constant 0 : index
    %c0_4 = arith.constant 0 : index
    %3 = vector.load %arg3[%c0_3, %c0_4] : memref<1x128xf32, #tpu.memory_space<vmem>>, vector<1x128xf32>
    %4 = vector.broadcast %3 : vector<1x128xf32> to vector<32x128xf32>
    %5 = arith.addf %2, %4 : vector<32x128xf32>
    %cst_5 = arith.constant 0.000000e+00 : f32
    %6 = vector.broadcast %cst_5 : f32 to vector<32x128xf32>
    %7 = arith.maximumf %5, %6 : vector<32x128xf32>
    %8 = vector.extract_strided_slice %7 {offsets = [0, 0], sizes = [4, 128], strides = [1, 1]} : vector<32x128xf32> to vector<4x128xf32>
    %cst_6 = arith.constant dense<0.000000e+00> : vector<128xf32>
    %9 = vector.multi_reduction <add>, %8, %cst_6 [0] : vector<4x128xf32> to vector<128xf32>
    %10 = vector.shape_cast %9 : vector<128xf32> to vector<1x128xf32>
    %11 = vector.extract_strided_slice %7 {offsets = [4, 0], sizes = [4, 128], strides = [1, 1]} : vector<32x128xf32> to vector<4x128xf32>
    %cst_7 = arith.constant dense<0.000000e+00> : vector<128xf32>
    %12 = vector.multi_reduction <add>, %11, %cst_7 [0] : vector<4x128xf32> to vector<128xf32>
    %13 = vector.shape_cast %12 : vector<128xf32> to vector<1x128xf32>
    %14 = vector.extract_strided_slice %7 {offsets = [8, 0], sizes = [4, 128], strides = [1, 1]} : vector<32x128xf32> to vector<4x128xf32>
    %cst_8 = arith.constant dense<0.000000e+00> : vector<128xf32>
    %15 = vector.multi_reduction <add>, %14, %cst_8 [0] : vector<4x128xf32> to vector<128xf32>
    %16 = vector.shape_cast %15 : vector<128xf32> to vector<1x128xf32>
    %17 = vector.extract_strided_slice %7 {offsets = [12, 0], sizes = [4, 128], strides = [1, 1]} : vector<32x128xf32> to vector<4x128xf32>
    %cst_9 = arith.constant dense<0.000000e+00> : vector<128xf32>
    %18 = vector.multi_reduction <add>, %17, %cst_9 [0] : vector<4x128xf32> to vector<128xf32>
    %19 = vector.shape_cast %18 : vector<128xf32> to vector<1x128xf32>
    %20 = vector.extract_strided_slice %7 {offsets = [16, 0], sizes = [4, 128], strides = [1, 1]} : vector<32x128xf32> to vector<4x128xf32>
    %cst_10 = arith.constant dense<0.000000e+00> : vector<128xf32>
    %21 = vector.multi_reduction <add>, %20, %cst_10 [0] : vector<4x128xf32> to vector<128xf32>
    %22 = vector.shape_cast %21 : vector<128xf32> to vector<1x128xf32>
    %23 = vector.extract_strided_slice %7 {offsets = [20, 0], sizes = [4, 128], strides = [1, 1]} : vector<32x128xf32> to vector<4x128xf32>
    %cst_11 = arith.constant dense<0.000000e+00> : vector<128xf32>
    %24 = vector.multi_reduction <add>, %23, %cst_11 [0] : vector<4x128xf32> to vector<128xf32>
    %25 = vector.shape_cast %24 : vector<128xf32> to vector<1x128xf32>
    %26 = vector.extract_strided_slice %7 {offsets = [24, 0], sizes = [4, 128], strides = [1, 1]} : vector<32x128xf32> to vector<4x128xf32>
    %cst_12 = arith.constant dense<0.000000e+00> : vector<128xf32>
    %27 = vector.multi_reduction <add>, %26, %cst_12 [0] : vector<4x128xf32> to vector<128xf32>
    %28 = vector.shape_cast %27 : vector<128xf32> to vector<1x128xf32>
    %29 = vector.extract_strided_slice %7 {offsets = [28, 0], sizes = [4, 128], strides = [1, 1]} : vector<32x128xf32> to vector<4x128xf32>
    %cst_13 = arith.constant dense<0.000000e+00> : vector<128xf32>
    %30 = vector.multi_reduction <add>, %29, %cst_13 [0] : vector<4x128xf32> to vector<128xf32>
    %31 = vector.shape_cast %30 : vector<128xf32> to vector<1x128xf32>
    %32 = tpu.concatenate %10, %13, %16, %19, %22, %25, %28, %31 in 0 : vector<1x128xf32>, vector<1x128xf32>, vector<1x128xf32>, vector<1x128xf32>, vector<1x128xf32>, vector<1x128xf32>, vector<1x128xf32>, vector<1x128xf32> -> vector<8x128xf32>
    %cst_14 = arith.constant 2.500000e-01 : f32
    %33 = vector.broadcast %cst_14 : f32 to vector<8x128xf32>
    %34 = arith.mulf %32, %33 : vector<8x128xf32>
    %c8_i32 = arith.constant 8 : i32
    %35 = arith.muli %arg0, %c8_i32 : i32
    %36 = tpu.assume_multiple %35, 8 : i32
    %37 = arith.index_cast %36 : i32 to index
    %c0_15 = arith.constant 0 : index
    %38 = vector.load %arg11[%37, %c0_15] : memref<16x128xf32, #tpu.memory_space<vmem>>, vector<8x128xf32>
    tpu.vector_store %arg11[%37, %c0_15], %34 {strides = array<i32>} : memref<16x128xf32, #tpu.memory_space<vmem>>, vector<8x128xf32>,
    %c1_i32 = arith.constant 1 : i32
    %39 = arith.cmpi eq, %arg0, %c1_i32 : i32
    %40 = arith.extui %39 : i1 to i32
    %c0_i32 = arith.constant 0 : i32
    %41 = arith.cmpi ne, %40, %c0_i32 : i32
    scf.if %41 {
      %c0_16 = arith.constant 0 : index
      %c0_17 = arith.constant 0 : index
      %42 = vector.load %arg11[%c0_16, %c0_17] : memref<16x128xf32, #tpu.memory_space<vmem>>, vector<16x128xf32>
      %43 = arith.truncf %42 : vector<16x128xf32> to vector<16x128xbf16>
      %c0_18 = arith.constant 0 : index
      %c0_19 = arith.constant 0 : index
      %44 = vector.load %arg4[%c0_18, %c0_19] : memref<128x128xbf16, #tpu.memory_space<vmem>>, vector<128x128xbf16>
      %cst_20 = arith.constant dense<0.000000e+00> : vector<16x128xf32>
      %45 = tpu.matmul %43, %44, %cst_20 {dimension_numbers = #tpu.dot_dimension_numbers<[1], [0], [0], [1], [0, 0, 1, 1], [], []>} : vector<16x128xbf16>, vector<128x128xbf16>, vector<16x128xf32> -> vector<16x128xf32>
      %c0_21 = arith.constant 0 : index
      %c0_22 = arith.constant 0 : index
      %46 = vector.load %arg5[%c0_21, %c0_22] : memref<1x128xf32, #tpu.memory_space<vmem>>, vector<1x128xf32>
      %47 = vector.broadcast %46 : vector<1x128xf32> to vector<16x128xf32>
      %48 = arith.addf %45, %47 : vector<16x128xf32>
      %cst_23 = arith.constant 5.000000e-01 : f32
      %49 = vector.broadcast %cst_23 : f32 to vector<16x128xf32>
      %50 = arith.mulf %49, %48 : vector<16x128xf32>
      %cst_24 = arith.constant 4.471500e-02 : f32
      %51 = vector.broadcast %cst_24 : f32 to vector<16x128xf32>
      %52 = arith.mulf %51, %48 : vector<16x128xf32>
      %53 = arith.mulf %52, %48 : vector<16x128xf32>
      %54 = arith.mulf %53, %48 : vector<16x128xf32>
      %55 = arith.addf %48, %54 : vector<16x128xf32>
      %cst_25 = arith.constant 0.797884583 : f32
      %56 = vector.broadcast %cst_25 : f32 to vector<16x128xf32>
      %57 = arith.mulf %56, %55 : vector<16x128xf32>
      %58 = math.tanh %57 : vector<16x128xf32>
      %cst_26 = arith.constant 1.000000e+00 : f32
      %59 = vector.broadcast %cst_26 : f32 to vector<16x128xf32>
      %60 = arith.addf %59, %58 : vector<16x128xf32>
      %61 = arith.mulf %50, %60 : vector<16x128xf32>
      %62 = arith.truncf %61 : vector<16x128xf32> to vector<16x128xbf16>
      %c0_27 = arith.constant 0 : index
      %c0_28 = arith.constant 0 : index
      %63 = vector.load %arg6[%c0_27, %c0_28] : memref<128x128xbf16, #tpu.memory_space<vmem>>, vector<128x128xbf16>
      %cst_29 = arith.constant dense<0.000000e+00> : vector<16x128xf32>
      %64 = tpu.matmul %62, %63, %cst_29 {dimension_numbers = #tpu.dot_dimension_numbers<[1], [0], [0], [1], [0, 0, 1, 1], [], []>} : vector<16x128xbf16>, vector<128x128xbf16>, vector<16x128xf32> -> vector<16x128xf32>
      %c0_30 = arith.constant 0 : index
      %c0_31 = arith.constant 0 : index
      %65 = vector.load %arg7[%c0_30, %c0_31] : memref<1x128xf32, #tpu.memory_space<vmem>>, vector<1x128xf32>
      %66 = vector.broadcast %65 : vector<1x128xf32> to vector<16x128xf32>
      %67 = arith.addf %64, %66 : vector<16x128xf32>
      %68 = arith.addf %67, %48 : vector<16x128xf32>
      %cst_32 = arith.constant dense<0.000000e+00> : vector<16xf32>
      %69 = vector.multi_reduction <add>, %68, %cst_32 [1] : vector<16x128xf32> to vector<16xf32>
      %70 = vector.shape_cast %69 : vector<16xf32> to vector<16x1xf32>
      %cst_33 = arith.constant 1.280000e+02 : f32
      %71 = vector.broadcast %cst_33 : f32 to vector<16x1xf32>
      %72 = arith.divf %70, %71 : vector<16x1xf32>
      %73 = vector.broadcast %72 : vector<16x1xf32> to vector<16x128xf32>
      %74 = arith.subf %68, %73 : vector<16x128xf32>
      %75 = vector.broadcast %72 : vector<16x1xf32> to vector<16x128xf32>
      %76 = arith.subf %68, %75 : vector<16x128xf32>
      %77 = arith.mulf %74, %76 : vector<16x128xf32>
      %cst_34 = arith.constant dense<0.000000e+00> : vector<16xf32>
      %78 = vector.multi_reduction <add>, %77, %cst_34 [1] : vector<16x128xf32> to vector<16xf32>
      %79 = vector.shape_cast %78 : vector<16xf32> to vector<16x1xf32>
      %cst_35 = arith.constant 1.280000e+02 : f32
      %80 = vector.broadcast %cst_35 : f32 to vector<16x1xf32>
      %81 = arith.divf %79, %80 : vector<16x1xf32>
      %82 = vector.broadcast %72 : vector<16x1xf32> to vector<16x128xf32>
      %83 = arith.subf %68, %82 : vector<16x128xf32>
      %cst_36 = arith.constant 9.99999974E-6 : f32
      %84 = vector.broadcast %cst_36 : f32 to vector<16x1xf32>
      %85 = arith.addf %81, %84 : vector<16x1xf32>
      %86 = math.rsqrt %85 : vector<16x1xf32>
      %87 = vector.broadcast %86 : vector<16x1xf32> to vector<16x128xf32>
      %88 = arith.mulf %83, %87 : vector<16x128xf32>
      %c0_37 = arith.constant 0 : index
      %c0_38 = arith.constant 0 : index
      %89 = vector.load %arg8[%c0_37, %c0_38] : memref<1x128xf32, #tpu.memory_space<vmem>>, vector<1x128xf32>
      %90 = vector.broadcast %89 : vector<1x128xf32> to vector<16x128xf32>
      %91 = arith.mulf %88, %90 : vector<16x128xf32>
      %c0_39 = arith.constant 0 : index
      %c0_40 = arith.constant 0 : index
      %92 = vector.load %arg9[%c0_39, %c0_40] : memref<1x128xf32, #tpu.memory_space<vmem>>, vector<1x128xf32>
      %93 = vector.broadcast %92 : vector<1x128xf32> to vector<16x128xf32>
      %94 = arith.addf %91, %93 : vector<16x128xf32>
      %95 = vector.extract_strided_slice %94 {offsets = [0, 0], sizes = [8, 128], strides = [1, 1]} : vector<16x128xf32> to vector<8x128xf32>
      %96 = arith.truncf %95 : vector<8x128xf32> to vector<8x128xbf16>
      %97 = vector.extract_strided_slice %94 {offsets = [8, 0], sizes = [8, 128], strides = [1, 1]} : vector<16x128xf32> to vector<8x128xf32>
      %98 = arith.truncf %97 : vector<8x128xf32> to vector<8x128xbf16>
      %cst_41 = arith.constant dense<0.000000e+00> : vector<8x8xf32>
      %99 = tpu.matmul %98, %96, %cst_41 {dimension_numbers = #tpu.dot_dimension_numbers<[1], [1], [0], [0], [0, 0, 1, 0], [], []>} : vector<8x128xbf16>, vector<8x128xbf16>, vector<8x8xf32> -> vector<8x8xf32>
      %cst_42 = arith.constant 1.000000e+00 : f32
      %100 = vector.broadcast %cst_42 : f32 to vector<8x8xf32>
      %101 = arith.divf %99, %100 : vector<8x8xf32>
      %cst_43 = arith.constant dense<0.000000e+00> : vector<8x8xf32>
      %102 = tpu.matmul %96, %96, %cst_43 {dimension_numbers = #tpu.dot_dimension_numbers<[1], [1], [0], [0], [0, 0, 1, 0], [], []>} : vector<8x128xbf16>, vector<8x128xbf16>, vector<8x8xf32> -> vector<8x8xf32>
      %cst_44 = arith.constant dense<0.000000e+00> : vector<8x8xf32>
      %103 = tpu.matmul %98, %98, %cst_44 {dimension_numbers = #tpu.dot_dimension_numbers<[1], [1], [0], [0], [0, 0, 1, 0], [], []>} : vector<8x128xbf16>, vector<8x128xbf16>, vector<8x8xf32> -> vector<8x8xf32>
      %104 = arith.addf %102, %103 : vector<8x8xf32>
      %cst_45 = arith.constant 5.000000e-01 : f32
      %105 = vector.broadcast %cst_45 : f32 to vector<8x8xf32>
      %106 = arith.mulf %104, %105 : vector<8x8xf32>
      %cst_46 = arith.constant dense<0xFF800000> : vector<8xf32>
      %107 = vector.multi_reduction <maximumf>, %106, %cst_46 [1] : vector<8x8xf32> to vector<8xf32>
      %108 = vector.shape_cast %107 : vector<8xf32> to vector<8x1xf32>
      %109 = vector.broadcast %108 : vector<8x1xf32> to vector<8x8xf32>
      %110 = arith.subf %106, %109 : vector<8x8xf32>
      %111 = math.exp %110 : vector<8x8xf32>
      %cst_47 = arith.constant dense<0.000000e+00> : vector<8xf32>
      %112 = vector.multi_reduction <add>, %111, %cst_47 [1] : vector<8x8xf32> to vector<8xf32>
      %113 = vector.shape_cast %112 : vector<8xf32> to vector<8x1xf32>
      %114 = vector.broadcast %113 : vector<8x1xf32> to vector<8x8xf32>
      %115 = arith.divf %111, %114 : vector<8x8xf32>
      %cst_48 = arith.constant dense<0xFF800000> : vector<8xf32>
      %116 = vector.multi_reduction <maximumf>, %101, %cst_48 [1] : vector<8x8xf32> to vector<8xf32>
      %117 = vector.shape_cast %116 : vector<8xf32> to vector<8x1xf32>
      %118 = vector.broadcast %117 : vector<8x1xf32> to vector<8x8xf32>
      %119 = arith.subf %101, %118 : vector<8x8xf32>
      %120 = math.exp %119 : vector<8x8xf32>
      %cst_49 = arith.constant dense<0.000000e+00> : vector<8xf32>
      %121 = vector.multi_reduction <add>, %120, %cst_49 [1] : vector<8x8xf32> to vector<8xf32>
      %122 = vector.shape_cast %121 : vector<8xf32> to vector<8x1xf32>
      %123 = math.log %122 : vector<8x1xf32>
      %124 = arith.addf %117, %123 : vector<8x1xf32>
      %cst_50 = arith.constant dense<0xFF800000> : vector<8xf32>
      %125 = vector.multi_reduction <maximumf>, %101, %cst_50 [0] : vector<8x8xf32> to vector<8xf32>
      %126 = vector.shape_cast %125 : vector<8xf32> to vector<1x8xf32>
      %127 = vector.broadcast %126 : vector<1x8xf32> to vector<8x8xf32>
      %128 = arith.subf %101, %127 : vector<8x8xf32>
      %129 = math.exp %128 : vector<8x8xf32>
      %cst_51 = arith.constant dense<0.000000e+00> : vector<8xf32>
      %130 = vector.multi_reduction <add>, %129, %cst_51 [0] : vector<8x8xf32> to vector<8xf32>
      %131 = vector.shape_cast %130 : vector<8xf32> to vector<1x8xf32>
      %132 = math.log %131 : vector<1x8xf32>
      %133 = arith.addf %126, %132 : vector<1x8xf32>
      %134 = arith.mulf %115, %101 : vector<8x8xf32>
      %cst_52 = arith.constant dense<0.000000e+00> : vector<8xf32>
      %135 = vector.multi_reduction <add>, %134, %cst_52 [1] : vector<8x8xf32> to vector<8xf32>
      %136 = vector.shape_cast %135 : vector<8xf32> to vector<8x1xf32>
      %cst_53 = arith.constant dense<0.000000e+00> : vector<1xf32>
      %137 = vector.multi_reduction <add>, %136, %cst_53 [0] : vector<8x1xf32> to vector<1xf32>
      %138 = vector.shape_cast %137 : vector<1xf32> to vector<1x1xf32>
      %cst_54 = arith.constant dense<0.000000e+00> : vector<8xf32>
      %139 = vector.multi_reduction <add>, %124, %cst_54 [1] : vector<8x1xf32> to vector<8xf32>
      %140 = vector.shape_cast %139 : vector<8xf32> to vector<8x1xf32>
      %cst_55 = arith.constant dense<0.000000e+00> : vector<1xf32>
      %141 = vector.multi_reduction <add>, %140, %cst_55 [0] : vector<8x1xf32> to vector<1xf32>
      %142 = vector.shape_cast %141 : vector<1xf32> to vector<1x1xf32>
      %cst_56 = arith.constant dense<0.000000e+00> : vector<8xf32>
      %143 = vector.multi_reduction <add>, %115, %cst_56 [0] : vector<8x8xf32> to vector<8xf32>
      %144 = vector.shape_cast %143 : vector<8xf32> to vector<1x8xf32>
      %145 = arith.mulf %144, %133 : vector<1x8xf32>
      %cst_57 = arith.constant dense<0.000000e+00> : vector<1xf32>
      %146 = vector.multi_reduction <add>, %145, %cst_57 [1] : vector<1x8xf32> to vector<1xf32>
      %147 = vector.shape_cast %146 : vector<1xf32> to vector<1x1xf32>
      %cst_58 = arith.constant dense<0.000000e+00> : vector<1xf32>
      %148 = vector.multi_reduction <add>, %147, %cst_58 [0] : vector<1x1xf32> to vector<1xf32>
      %149 = vector.shape_cast %148 : vector<1xf32> to vector<1x1xf32>
      %cst_59 = arith.constant -2.000000e+00 : f32
      %150 = vector.broadcast %cst_59 : f32 to vector<1x1xf32>
      %151 = arith.mulf %150, %138 : vector<1x1xf32>
      %152 = arith.addf %151, %142 : vector<1x1xf32>
      %153 = arith.addf %152, %149 : vector<1x1xf32>
      %cst_60 = arith.constant 1.600000e+01 : f32
      %154 = vector.broadcast %cst_60 : f32 to vector<1x1xf32>
      %155 = arith.divf %153, %154 : vector<1x1xf32>
      %c0_61 = arith.constant 0 : index
      %c0_62 = arith.constant 0 : index
      %156 = vector.load %arg10[%c0_61, %c0_62] : memref<1x1xf32, #tpu.memory_space<vmem>>, vector<1x1xf32>
      tpu.vector_store %arg10[%c0_61, %c0_62], %155 {strides = array<i32>} : memref<1x1xf32, #tpu.memory_space<vmem>>, vector<1x1xf32>,
    } else {
    }
    return
  }
  func.func @transform_0(%arg0: i32) -> (i32, i32) {
    %c0_i32 = arith.constant 0 : i32
    %c0_i32_0 = arith.constant 0 : i32
    return %arg0, %c0_i32 : i32, i32
  }
  func.func @transform_1(%arg0: i32) -> (i32, i32) {
    %c0_i32 = arith.constant 0 : i32
    %c0_i32_0 = arith.constant 0 : i32
    %c0_i32_1 = arith.constant 0 : i32
    return %c0_i32, %c0_i32_0 : i32, i32
  }
  func.func @transform_2(%arg0: i32) -> (i32, i32) {
    %c0_i32 = arith.constant 0 : i32
    %c0_i32_0 = arith.constant 0 : i32
    %c0_i32_1 = arith.constant 0 : i32
    return %c0_i32, %c0_i32_0 : i32, i32
  }
  func.func @transform_3(%arg0: i32) -> (i32, i32) {
    %c0_i32 = arith.constant 0 : i32
    %c0_i32_0 = arith.constant 0 : i32
    %c0_i32_1 = arith.constant 0 : i32
    return %c0_i32, %c0_i32_0 : i32, i32
  }
  func.func @transform_4(%arg0: i32) -> (i32, i32) {
    %c0_i32 = arith.constant 0 : i32
    %c0_i32_0 = arith.constant 0 : i32
    %c0_i32_1 = arith.constant 0 : i32
    return %c0_i32, %c0_i32_0 : i32, i32
  }
  func.func @transform_5(%arg0: i32) -> (i32, i32) {
    %c0_i32 = arith.constant 0 : i32
    %c0_i32_0 = arith.constant 0 : i32
    %c0_i32_1 = arith.constant 0 : i32
    return %c0_i32, %c0_i32_0 : i32, i32
  }
  func.func @transform_6(%arg0: i32) -> (i32, i32) {
    %c0_i32 = arith.constant 0 : i32
    %c0_i32_0 = arith.constant 0 : i32
    %c0_i32_1 = arith.constant 0 : i32
    return %c0_i32, %c0_i32_0 : i32, i32
  }
  func.func @transform_7(%arg0: i32) -> (i32, i32) {
    %c0_i32 = arith.constant 0 : i32
    %c0_i32_0 = arith.constant 0 : i32
    %c0_i32_1 = arith.constant 0 : i32
    return %c0_i32, %c0_i32_0 : i32, i32
  }
  func.func @transform_8(%arg0: i32) -> (i32, i32) {
    %c0_i32 = arith.constant 0 : i32
    %c0_i32_0 = arith.constant 0 : i32
    %c0_i32_1 = arith.constant 0 : i32
    return %c0_i32, %c0_i32_0 : i32, i32
  }
  func.func @transform_9(%arg0: i32) -> (i32, i32) {
    %c0_i32 = arith.constant 0 : i32
    %c0_i32_0 = arith.constant 0 : i32
    %c0_i32_1 = arith.constant 0 : i32
    return %c0_i32, %c0_i32_0 : i32, i32
  }
}

</mosaic_0001>

<llo_original>
// kernel: tpu_custom_call.1
$region0: #{tpu_custom_call.1}
  #allocation0 [shape = 'u32[]', space=smem, size = 0x4, offset = 0x4, fixed_abs, tag = 'smem constant byte address 0x4 - core index']
  #allocation1 [shape = 'u32[144,128]{1,0:T(1,128)}', space=vmem, size = 0x12000, scoped, tag = 'internal scratch']
  #allocation2 [shape = 'f32[16,128]{1,0:T(8,128)}', space=vmem, size = 0x2000, scoped, tag = 'scratch operand']
  %s0 = inlined_call_operand.hbm [shape: bf16[64,256], index: 0, kind: input, shape index: {}]
  %s1 = inlined_call_operand.hbm [shape: bf16[256,128], index: 1, kind: input, shape index: {}]
  %s2 = inlined_call_operand.vmem [shape: f32[1,128], index: 2, kind: input, shape index: {}]
  %s3 = inlined_call_operand.hbm [shape: bf16[128,128], index: 3, kind: input, shape index: {}]
  %s4 = inlined_call_operand.vmem [shape: f32[1,128], index: 4, kind: input, shape index: {}]
  %s5 = inlined_call_operand.hbm [shape: bf16[128,128], index: 5, kind: input, shape index: {}]
  %s6 = inlined_call_operand.vmem [shape: f32[1,128], index: 6, kind: input, shape index: {}]
  %s7 = inlined_call_operand.vmem [shape: f32[1,128], index: 7, kind: input, shape index: {}]
  %s8 = inlined_call_operand.vmem [shape: f32[1,128], index: 8, kind: input, shape index: {}]
  %s9 = inlined_call_operand.hbm [shape: f32[1,1], index: 9, kind: output, shape index: {}]
  %s10 = sld [smem:[#allocation0]]
  $region89: #{tpu_custom_call.1} parent=0
    _
  %s12 = ssub.s32 1, %s10
  %s13 = scalar_select 0, %s12, %s10
  $region1: #{tpu_custom_call.1} parent=0
    #allocation3 [shape = 'u8[32768]{0}', space=vmem, size = 0x8000, scoped, tag = 'input window, operand 0']
    #allocation4 [shape = 's32[2]{0}', space=sflag, size = 0x8, scoped, tag = 'scoped memory for tpu_custom_call.1']
    #allocation5 [shape = 's32[2]{0}', space=sflag, size = 0x8, scoped, tag = 'scoped memory for tpu_custom_call.1']
    #allocation6 [shape = 'u8[65536]{0}', space=vmem, size = 0x10000, scoped, tag = 'input window, operand 1, single buffered']
    #allocation7 [shape = 's32[1]{0}', space=sflag, size = 0x4, scoped, tag = 'scoped memory for tpu_custom_call.1']
    #allocation8 [shape = 'u8[32768]{0}', space=vmem, size = 0x8000, scoped, tag = 'input window, operand 3, single buffered']
    #allocation9 [shape = 'u8[32768]{0}', space=vmem, size = 0x8000, scoped, tag = 'input window, operand 5, single buffered']
    #allocation10 [shape = 's32[1]{0}', space=sflag, size = 0x4, scoped, tag = 'scoped memory for tpu_custom_call.1']
    #allocation11 [shape = 'u8[512]{0}', space=vmem, size = 0x400, scoped, tag = 'output window, operand 0, single buffered']
    %14 = vsyncpa [#allocation4], 0
    %s15 = scalar_lea.sflag [#allocation4], 1
    %16 = vsyncpa %s15, 0
    %17 = vsyncpa [#allocation7], 0
    %18 = vsyncpa [#allocation10], 0
    %19 = vsyncpa [#allocation5], 0
    loop: start=0, step=1, limit=4
    $region2: #{tpu_custom_call.1} parent=1 // loop_pre_header
      _
    $region3: #{tpu_custom_call.1} parent=1 // loop_header
      %s21 = sphi 0, %s25
      %p22 = scmp.ge.s32.totalorder %s21, 4
      %s31 = sphi 0, %s33
      %s34 = sphi 0, %s31
      %s35 = sphi 0, %s34
      %s51 = sphi 0, %s35
      %s55 = sphi 0, %s55
      %s57 = sphi 0, %s55
      %s58 = sphi 0, %s57
      %s72 = sphi 0, %s58
      %s76 = sphi 0, %s76
      %s78 = sphi 0, %s76
      %s79 = sphi 0, %s78
      %s93 = sphi 0, %s79
      %s97 = sphi 0, %s97
      %s99 = sphi 0, %s97
      %s100 = sphi 0, %s99
      %s114 = sphi 0, %s100
      %s118 = sphi 0, %s118
      %s120 = sphi 0, %s118
      %s121 = sphi 0, %s120
      %s135 = sphi 0, %s121
      %s139 = sphi 0, %s139
      %s141 = sphi 0, %s139
      %s142 = sphi 0, %s141
      %s156 = sphi 0, %s142
      %s160 = sphi 0, %s160
      %s162 = sphi 0, %s160
      %s163 = sphi 0, %s162
      %s177 = sphi 0, %s163
      %s181 = sphi 0, %s181
      %s183 = sphi 0, %s181
      %s184 = sphi 0, %s183
      %s198 = sphi 0, %s184
      %s202 = sphi 0, %s202
      %s204 = sphi 0, %s202
      %s205 = sphi 0, %s204
      %s219 = sphi 0, %s205
      %s223 = sphi 0, %s223
      %s225 = sphi 0, %s223
      %s226 = sphi 0, %s225
      %s240 = sphi 0, %s226
    $region4: #{tpu_custom_call.1} parent=1 // loop_header_branch
      %24 = sbr.rel (%p22) target = $region8
    $region5: #{tpu_custom_call.1} parent=1 // loop_body
      %s26 = ssub.s32 %s21, 1
      %s27 = ssub.s32 %s21, 2
      %s28 = sadd.s32 %s21, 1
      %s29 = ssub.s32 %s21, %s28
      %p30 = scmp.eq.s32.totalorder %s29, 0
      %s32 = sadd.s32 %s31, 1
      %s33 = scalar_select %p30, %s31, %s32
      %p36 = pneg %p30
      %p37 = scmp.eq.s32.totalorder %s21, 1
      %p38 = por %p36, %p37
      %p39 = scmp.ne.s32.totalorder %s31, %s34
      %p40 = scmp.eq.s32.totalorder %s21, 0
      %p41 = por %p39, %p40
      %p42 = scmp.ne.s32.totalorder %s31, %s34
      %p43 = scmp.eq.s32.totalorder %s26, 1
      %p44 = por %p42, %p43
      %p45 = scmp.ne.s32.totalorder %s34, %s35
      %p46 = scmp.eq.s32.totalorder %s26, 0
      %p47 = por %p45, %p46
      %p48 = scmp.ne.s32.totalorder %s34, %s35
      %p49 = scmp.eq.s32.totalorder %s27, 1
      %p50 = por %p48, %p49
      %p52 = scmp.ne.s32.totalorder %s35, %s51
      %p53 = scmp.eq.s32.totalorder %s27, 0
      %p54 = por %p52, %p53
      %s56 = sadd.s32 %s55, 1
      %p59 = scmp.eq.s32.totalorder %s21, 1
      %p60 = scmp.ne.s32.totalorder %s55, %s57
      %p61 = scmp.eq.s32.totalorder %s21, 0
      %p62 = por %p60, %p61
      %p63 = scmp.ne.s32.totalorder %s55, %s57
      %p64 = scmp.eq.s32.totalorder %s26, 1
      %p65 = por %p63, %p64
      %p66 = scmp.ne.s32.totalorder %s57, %s58
      %p67 = scmp.eq.s32.totalorder %s26, 0
      %p68 = por %p66, %p67
      %p69 = scmp.ne.s32.totalorder %s57, %s58
      %p70 = scmp.eq.s32.totalorder %s27, 1
      %p71 = por %p69, %p70
      %p73 = scmp.ne.s32.totalorder %s58, %s72
      %p74 = scmp.eq.s32.totalorder %s27, 0
      %p75 = por %p73, %p74
      %s77 = sadd.s32 %s76, 1
      %p80 = scmp.eq.s32.totalorder %s21, 1
      %p81 = scmp.ne.s32.totalorder %s76, %s78
      %p82 = scmp.eq.s32.totalorder %s21, 0
      %p83 = por %p81, %p82
      %p84 = scmp.ne.s32.totalorder %s76, %s78
      %p85 = scmp.eq.s32.totalorder %s26, 1
      %p86 = por %p84, %p85
      %p87 = scmp.ne.s32.totalorder %s78, %s79
      %p88 = scmp.eq.s32.totalorder %s26, 0
      %p89 = por %p87, %p88
      %p90 = scmp.ne.s32.totalorder %s78, %s79
      %p91 = scmp.eq.s32.totalorder %s27, 1
      %p92 = por %p90, %p91
      %p94 = scmp.ne.s32.totalorder %s79, %s93
      %p95 = scmp.eq.s32.totalorder %s27, 0
      %p96 = por %p94, %p95
      %s98 = sadd.s32 %s97, 1
      %p101 = scmp.eq.s32.totalorder %s21, 1
      %p102 = scmp.ne.s32.totalorder %s97, %s99
      %p103 = scmp.eq.s32.totalorder %s21, 0
      %p104 = por %p102, %p103
      %p105 = scmp.ne.s32.totalorder %s97, %s99
      %p106 = scmp.eq.s32.totalorder %s26, 1
      %p107 = por %p105, %p106
      %p108 = scmp.ne.s32.totalorder %s99, %s100
      %p109 = scmp.eq.s32.totalorder %s26, 0
      %p110 = por %p108, %p109
      %p111 = scmp.ne.s32.totalorder %s99, %s100
      %p112 = scmp.eq.s32.totalorder %s27, 1
      %p113 = por %p111, %p112
      %p115 = scmp.ne.s32.totalorder %s100, %s114
      %p116 = scmp.eq.s32.totalorder %s27, 0
      %p117 = por %p115, %p116
      %s119 = sadd.s32 %s118, 1
      %p122 = scmp.eq.s32.totalorder %s21, 1
      %p123 = scmp.ne.s32.totalorder %s118, %s120
      %p124 = scmp.eq.s32.totalorder %s21, 0
      %p125 = por %p123, %p124
      %p126 = scmp.ne.s32.totalorder %s118, %s120
      %p127 = scmp.eq.s32.totalorder %s26, 1
      %p128 = por %p126, %p127
      %p129 = scmp.ne.s32.totalorder %s120, %s121
      %p130 = scmp.eq.s32.totalorder %s26, 0
      %p131 = por %p129, %p130
      %p132 = scmp.ne.s32.totalorder %s120, %s121
      %p133 = scmp.eq.s32.totalorder %s27, 1
      %p134 = por %p132, %p133
      %p136 = scmp.ne.s32.totalorder %s121, %s135
      %p137 = scmp.eq.s32.totalorder %s27, 0
      %p138 = por %p136, %p137
      %s140 = sadd.s32 %s139, 1
      %p143 = scmp.eq.s32.totalorder %s21, 1
      %p144 = scmp.ne.s32.totalorder %s139, %s141
      %p145 = scmp.eq.s32.totalorder %s21, 0
      %p146 = por %p144, %p145
      %p147 = scmp.ne.s32.totalorder %s139, %s141
      %p148 = scmp.eq.s32.totalorder %s26, 1
      %p149 = por %p147, %p148
      %p150 = scmp.ne.s32.totalorder %s141, %s142
      %p151 = scmp.eq.s32.totalorder %s26, 0
      %p152 = por %p150, %p151
      %p153 = scmp.ne.s32.totalorder %s141, %s142
      %p154 = scmp.eq.s32.totalorder %s27, 1
      %p155 = por %p153, %p154
      %p157 = scmp.ne.s32.totalorder %s142, %s156
      %p158 = scmp.eq.s32.totalorder %s27, 0
      %p159 = por %p157, %p158
      %s161 = sadd.s32 %s160, 1
      %p164 = scmp.eq.s32.totalorder %s21, 1
      %p165 = scmp.ne.s32.totalorder %s160, %s162
      %p166 = scmp.eq.s32.totalorder %s21, 0
      %p167 = por %p165, %p166
      %p168 = scmp.ne.s32.totalorder %s160, %s162
      %p169 = scmp.eq.s32.totalorder %s26, 1
      %p170 = por %p168, %p169
      %p171 = scmp.ne.s32.totalorder %s162, %s163
      %p172 = scmp.eq.s32.totalorder %s26, 0
      %p173 = por %p171, %p172
      %p174 = scmp.ne.s32.totalorder %s162, %s163
      %p175 = scmp.eq.s32.totalorder %s27, 1
      %p176 = por %p174, %p175
      %p178 = scmp.ne.s32.totalorder %s163, %s177
      %p179 = scmp.eq.s32.totalorder %s27, 0
      %p180 = por %p178, %p179
      %s182 = sadd.s32 %s181, 1
      %p185 = scmp.eq.s32.totalorder %s21, 1
      %p186 = scmp.ne.s32.totalorder %s181, %s183
      %p187 = scmp.eq.s32.totalorder %s21, 0
      %p188 = por %p186, %p187
      %p189 = scmp.ne.s32.totalorder %s181, %s183
      %p190 = scmp.eq.s32.totalorder %s26, 1
      %p191 = por %p189, %p190
      %p192 = scmp.ne.s32.totalorder %s183, %s184
      %p193 = scmp.eq.s32.totalorder %s26, 0
      %p194 = por %p192, %p193
      %p195 = scmp.ne.s32.totalorder %s183, %s184
      %p196 = scmp.eq.s32.totalorder %s27, 1
      %p197 = por %p195, %p196
      %p199 = scmp.ne.s32.totalorder %s184, %s198
      %p200 = scmp.eq.s32.totalorder %s27, 0
      %p201 = por %p199, %p200
      %s203 = sadd.s32 %s202, 1
      %p206 = scmp.eq.s32.totalorder %s21, 1
      %p207 = scmp.ne.s32.totalorder %s202, %s204
      %p208 = scmp.eq.s32.totalorder %s21, 0
      %p209 = por %p207, %p208
      %p210 = scmp.ne.s32.totalorder %s202, %s204
      %p211 = scmp.eq.s32.totalorder %s26, 1
      %p212 = por %p210, %p211
      %p213 = scmp.ne.s32.totalorder %s204, %s205
      %p214 = scmp.eq.s32.totalorder %s26, 0
      %p215 = por %p213, %p214
      %p216 = scmp.ne.s32.totalorder %s204, %s205
      %p217 = scmp.eq.s32.totalorder %s27, 1
      %p218 = por %p216, %p217
      %p220 = scmp.ne.s32.totalorder %s205, %s219
      %p221 = scmp.eq.s32.totalorder %s27, 0
      %p222 = por %p220, %p221
      %s224 = sadd.s32 %s223, 1
      %p227 = scmp.eq.s32.totalorder %s21, 1
      %p228 = scmp.ne.s32.totalorder %s223, %s225
      %p229 = scmp.eq.s32.totalorder %s21, 0
      %p230 = por %p228, %p229
      %p231 = scmp.ne.s32.totalorder %s223, %s225
      %p232 = scmp.eq.s32.totalorder %s26, 1
      %p233 = por %p231, %p232
      %p234 = scmp.ne.s32.totalorder %s225, %s226
      %p235 = scmp.eq.s32.totalorder %s26, 0
      %p236 = por %p234, %p235
      %p237 = scmp.ne.s32.totalorder %s225, %s226
      %p238 = scmp.eq.s32.totalorder %s27, 1
      %p239 = por %p237, %p238
      %p241 = scmp.ne.s32.totalorder %s226, %s240
      %p242 = scmp.eq.s32.totalorder %s27, 0
      %p243 = por %p241, %p242
      %p244 = scmp.le.s32.totalorder 1, %s21
      %p245 = scmp.lt.s32.totalorder %s21, 3
      %p246 = pnand %p244, %p245
      %p247 = pneg %p246
      // Predicated region
      $region9: #{tpu_custom_call.1} parent=5 // pred_check
        _
      $region10: #{tpu_custom_call.1} parent=5 // pred_check_branch
        %249 = sbr.rel (%p246) target = $region12
      $region11: #{tpu_custom_call.1} parent=5 // pred_region
        %s250 = ssub.s32 %s21, 1
        // Predicated region
        $region13: #{tpu_custom_call.1} parent=11 // pred_check
          %p251 = pneg %p68
        $region14: #{tpu_custom_call.1} parent=11 // pred_check_branch
          %253 = sbr.rel (%p251) target = $region16
        $region15: #{tpu_custom_call.1} parent=11 // pred_region
          %s255 = ssub.s32 2048, 2048
          %256 = vsyncadd [#allocation7], %s255
          %s257 = sshll.u32 [#allocation6], 4
          %s258 = int_to_ptr.vmem [resolvable:$true] %s257
          %263 = dma.hbm_to_vmem [thread:$0]  %s1, 2048, %s258, [#allocation7], 64, 64, 4
        $region16: #{tpu_custom_call.1} parent=11 // pred_fallthru
          _
        // Predicated region
        $region17: #{tpu_custom_call.1} parent=11 // pred_check
          %p264 = pneg %p89
        $region18: #{tpu_custom_call.1} parent=11 // pred_check_branch
          %266 = sbr.rel (%p264) target = $region20
        $region19: #{tpu_custom_call.1} parent=11 // pred_region
          _
        $region20: #{tpu_custom_call.1} parent=11 // pred_fallthru
          _
        // Predicated region
        $region21: #{tpu_custom_call.1} parent=11 // pred_check
          %p267 = pneg %p110
        $region22: #{tpu_custom_call.1} parent=11 // pred_check_branch
          %269 = sbr.rel (%p267) target = $region24
        $region23: #{tpu_custom_call.1} parent=11 // pred_region
          %s271 = ssub.s32 1024, 1024
          %272 = vsyncadd [#allocation7], %s271
          %s273 = sshll.u32 [#allocation8], 4
          %s274 = int_to_ptr.vmem [resolvable:$true] %s273
          %279 = dma.hbm_to_vmem [thread:$0]  %s3, 1024, %s274, [#allocation7], 64, 64, 4
        $region24: #{tpu_custom_call.1} parent=11 // pred_fallthru
          _
        // Predicated region
        $region25: #{tpu_custom_call.1} parent=11 // pred_check
          %p280 = pneg %p131
        $region26: #{tpu_custom_call.1} parent=11 // pred_check_branch
          %282 = sbr.rel (%p280) target = $region28
        $region27: #{tpu_custom_call.1} parent=11 // pred_region
          _
        $region28: #{tpu_custom_call.1} parent=11 // pred_fallthru
          _
        // Predicated region
        $region29: #{tpu_custom_call.1} parent=11 // pred_check
          %p283 = pneg %p152
        $region30: #{tpu_custom_call.1} parent=11 // pred_check_branch
          %285 = sbr.rel (%p283) target = $region32
        $region31: #{tpu_custom_call.1} parent=11 // pred_region
          %s287 = ssub.s32 1024, 1024
          %288 = vsyncadd [#allocation10], %s287
          %s289 = sshll.u32 [#allocation9], 4
          %s290 = int_to_ptr.vmem [resolvable:$true] %s289
          %295 = dma.hbm_to_vmem [thread:$0]  %s5, 1024, %s290, [#allocation10], 64, 64, 4
        $region32: #{tpu_custom_call.1} parent=11 // pred_fallthru
          _
        // Predicated region
        $region33: #{tpu_custom_call.1} parent=11 // pred_check
          %p296 = pneg %p173
        $region34: #{tpu_custom_call.1} parent=11 // pred_check_branch
          %298 = sbr.rel (%p296) target = $region36
        $region35: #{tpu_custom_call.1} parent=11 // pred_region
          _
        $region36: #{tpu_custom_call.1} parent=11 // pred_fallthru
          _
        // Predicated region
        $region37: #{tpu_custom_call.1} parent=11 // pred_check
          %p299 = pneg %p194
        $region38: #{tpu_custom_call.1} parent=11 // pred_check_branch
          %301 = sbr.rel (%p299) target = $region40
        $region39: #{tpu_custom_call.1} parent=11 // pred_region
          _
        $region40: #{tpu_custom_call.1} parent=11 // pred_fallthru
          _
        // Predicated region
        $region41: #{tpu_custom_call.1} parent=11 // pred_check
          %p302 = pneg %p215
        $region42: #{tpu_custom_call.1} parent=11 // pred_check_branch
          %304 = sbr.rel (%p302) target = $region44
        $region43: #{tpu_custom_call.1} parent=11 // pred_region
          _
        $region44: #{tpu_custom_call.1} parent=11 // pred_fallthru
          _
      $region12: #{tpu_custom_call.1} parent=5 // pred_fallthru
        _
      %p305 = scmp.lt.s32.totalorder %s21, 2
      // Predicated region
      $region45: #{tpu_custom_call.1} parent=5 // pred_check
        %p306 = pneg %p305
      $region46: #{tpu_custom_call.1} parent=5 // pred_check_branch
        %308 = sbr.rel (%p306) target = $region48
      $region47: #{tpu_custom_call.1} parent=5 // pred_region
        // Predicated region
        $region49: #{tpu_custom_call.1} parent=47 // pred_check
          %p309 = pneg %p41
        $region50: #{tpu_custom_call.1} parent=47 // pred_check_branch
          %311 = sbr.rel (%p309) target = $region52
        $region51: #{tpu_custom_call.1} parent=47 // pred_region
          %s312 = sand.u32 %s31, 1
          %s313 = scalar_lea.sflag [#allocation4], %s312
          %s314 = sand.u32 %s31, 1
          %s315 = smul.addr %s314, 32
          %s316 = scalar_lea.vmem [#allocation3], %s315
          %s317 = smul.u32 4, %s21
          %s319 = ssub.s32 512, 512
          %320 = vsyncadd %s313, %s319
          %s321 = smul.addr %s317, 2
          %s322 = smul.addr %s321, 64
          %s323 = scalar_lea.hbm %s0, %s322
          %s324 = sshll.u32 %s316, 4
          %s325 = int_to_ptr.vmem [resolvable:$true] %s324
          %330 = dma.hbm_to_vmem [thread:$0]  %s323, 512, %s325, %s313, 128, 128, 8
        $region52: #{tpu_custom_call.1} parent=47 // pred_fallthru
          _
      $region48: #{tpu_custom_call.1} parent=5 // pred_fallthru
        _
      %p331 = scmp.le.s32.totalorder 1, %s21
      %p332 = scmp.lt.s32.totalorder %s21, 3
      %p333 = pnand %p331, %p332
      %p334 = pneg %p333
      // Predicated region
      $region53: #{tpu_custom_call.1} parent=5 // pred_check
        _
      $region54: #{tpu_custom_call.1} parent=5 // pred_check_branch
        %336 = sbr.rel (%p333) target = $region56
      $region55: #{tpu_custom_call.1} parent=5 // pred_region
        %s337 = ssub.s32 %s21, 1
        %s338 = sand.u32 %s34, 1
        %s339 = scalar_lea.sflag [#allocation4], %s338
        %s340 = sand.u32 %s34, 1
        %s341 = smul.addr %s340, 32
        %s342 = scalar_lea.vmem [#allocation3], %s341
        // Predicated region
        $region57: #{tpu_custom_call.1} parent=55 // pred_check
          %p343 = pneg %p47
        $region58: #{tpu_custom_call.1} parent=55 // pred_check_branch
          %345 = sbr.rel (%p343) target = $region60
        $region59: #{tpu_custom_call.1} parent=55 // pred_region
          %346 = dma.done %s339, 512
        $region60: #{tpu_custom_call.1} parent=55 // pred_fallthru
          _
        // Predicated region
        $region61: #{tpu_custom_call.1} parent=55 // pred_check
          %p347 = pneg %p68
        $region62: #{tpu_custom_call.1} parent=55 // pred_check_branch
          %349 = sbr.rel (%p347) target = $region64
        $region63: #{tpu_custom_call.1} parent=55 // pred_region
          %350 = dma.done [#allocation7], 2048
        $region64: #{tpu_custom_call.1} parent=55 // pred_fallthru
          _
        // Predicated region
        $region65: #{tpu_custom_call.1} parent=55 // pred_check
          %p351 = pneg %p110
        $region66: #{tpu_custom_call.1} parent=55 // pred_check_branch
          %353 = sbr.rel (%p351) target = $region68
        $region67: #{tpu_custom_call.1} parent=55 // pred_region
          %354 = dma.done [#allocation7], 1024
        $region68: #{tpu_custom_call.1} parent=55 // pred_fallthru
          _
        // Predicated region
        $region69: #{tpu_custom_call.1} parent=55 // pred_check
          %p355 = pneg %p152
        $region70: #{tpu_custom_call.1} parent=55 // pred_check_branch
          %357 = sbr.rel (%p355) target = $region72
        $region71: #{tpu_custom_call.1} parent=55 // pred_region
          %358 = dma.done [#allocation10], 1024
        $region72: #{tpu_custom_call.1} parent=55 // pred_fallthru
          _
        %s359 = sand.u32 %s34, 1
        %s360 = scalar_lea.sflag [#allocation4], %s359
        %s361 = sand.u32 %s34, 1
        %s362 = smul.addr %s361, 32
        %s363 = scalar_lea.vmem [#allocation3], %s362
        %p364 = pneg %p47
        %p365 = pneg %p44
        %p366 = pneg %p68
        %p367 = pneg %p65
        %p368 = pneg %p89
        %p369 = pneg %p86
        %p370 = pneg %p110
        %p371 = pneg %p107
        %p372 = pneg %p131
        %p373 = pneg %p128
        %p374 = pneg %p152
        %p375 = pneg %p149
        %p376 = pneg %p173
        %p377 = pneg %p170
        %p378 = pneg %p194
        %p379 = pneg %p191
        %p380 = pneg %p215
        %p381 = pneg %p212
        %p382 = pneg %p236
        %p383 = pneg %p233
        %s384 = smul.u32 4, %s26
        %v386 = vld [vmem:[%s342] sm:$0xff]
        %v387 = vld [vmem:[%s342 + $0x8] sm:$0xff]
        %v388 = vld [vmem:[%s342 + $0x10] sm:$0xff]
        %v389 = vld [vmem:[%s342 + $0x18] sm:$0xff]
        %v390 = vld [vmem:[#allocation6] sm:$0xf]
        %v391 = vld [vmem:[#allocation6 + $0x4] sm:$0xf]
        %v392 = vld [vmem:[#allocation6 + $0x8] sm:$0xf]
        %v393 = vld [vmem:[#allocation6 + $0xc] sm:$0xf]
        %v394 = vld [vmem:[#allocation6 + $0x10] sm:$0xf]
        %v395 = vld [vmem:[#allocation6 + $0x14] sm:$0xf]
        %v396 = vld [vmem:[#allocation6 + $0x18] sm:$0xf]
        %v397 = vld [vmem:[#allocation6 + $0x1c] sm:$0xf]
        %v398 = vld [vmem:[#allocation6 + $0x20] sm:$0xf]
        %v399 = vld [vmem:[#allocation6 + $0x24] sm:$0xf]
        %v400 = vld [vmem:[#allocation6 + $0x28] sm:$0xf]
        %v401 = vld [vmem:[#allocation6 + $0x2c] sm:$0xf]
        %v402 = vld [vmem:[#allocation6 + $0x30] sm:$0xf]
        %v403 = vld [vmem:[#allocation6 + $0x34] sm:$0xf]
        %v404 = vld [vmem:[#allocation6 + $0x38] sm:$0xf]
        %v405 = vld [vmem:[#allocation6 + $0x3c] sm:$0xf]
        %v406 = vld [vmem:[#allocation6 + $0x40] sm:$0xf]
        %v407 = vld [vmem:[#allocation6 + $0x44] sm:$0xf]
        %v408 = vld [vmem:[#allocation6 + $0x48] sm:$0xf]
        %v409 = vld [vmem:[#allocation6 + $0x4c] sm:$0xf]
        %v410 = vld [vmem:[#allocation6 + $0x50] sm:$0xf]
        %v411 = vld [vmem:[#allocation6 + $0x54] sm:$0xf]
        %v412 = vld [vmem:[#allocation6 + $0x58] sm:$0xf]
        %v413 = vld [vmem:[#allocation6 + $0x5c] sm:$0xf]
        %v414 = vld [vmem:[#allocation6 + $0x60] sm:$0xf]
        %v415 = vld [vmem:[#allocation6 + $0x64] sm:$0xf]
        %v416 = vld [vmem:[#allocation6 + $0x68] sm:$0xf]
        %v417 = vld [vmem:[#allocation6 + $0x6c] sm:$0xf]
        %v418 = vld [vmem:[#allocation6 + $0x70] sm:$0xf]
        %v419 = vld [vmem:[#allocation6 + $0x74] sm:$0xf]
        %v420 = vld [vmem:[#allocation6 + $0x78] sm:$0xf]
        %v421 = vld [vmem:[#allocation6 + $0x7c] sm:$0xf]
        %v422 = vld [vmem:[%s2] sm:$0x1]
        %v424 = vlaneseq
        %v425 = vshrl.u32 %v424, 7
        %v426 = vsub.s32 0, %v425
        %v427 = vrot.slane %v422, %v426
        %v433 = vunpack.c.l.b16 %v386
        %v434 = vunpack.c.h.b16 %v386
        %v435 = vunpack.c.l.b16 %v387
        %v436 = vunpack.c.h.b16 %v387
        %v437 = vunpack.c.l.b16 %v388
        %v438 = vunpack.c.h.b16 %v388
        %v439 = vunpack.c.l.b16 %v389
        %v440 = vunpack.c.h.b16 %v389
        %v441 = vpack.c.b16 %v435, %v433
        %v442 = vpack.c.b16 %v436, %v434
        %v443 = vpack.c.b16 %v439, %v437
        %v444 = vpack.c.b16 %v440, %v438
        %v481 = vunpack.c.l.b16 %v390
        %v482 = vunpack.c.l.b16 %v391
        %v483 = vunpack.c.l.b16 %v392
        %v484 = vunpack.c.l.b16 %v393
        %v485 = vunpack.c.l.b16 %v394
        %v486 = vunpack.c.l.b16 %v395
        %v487 = vunpack.c.l.b16 %v396
        %v488 = vunpack.c.l.b16 %v397
        %v489 = vunpack.c.l.b16 %v398
        %v490 = vunpack.c.l.b16 %v399
        %v491 = vunpack.c.l.b16 %v400
        %v492 = vunpack.c.l.b16 %v401
        %v493 = vunpack.c.l.b16 %v402
        %v494 = vunpack.c.l.b16 %v403
        %v495 = vunpack.c.l.b16 %v404
        %v496 = vunpack.c.l.b16 %v405
        %v497 = vunpack.c.l.b16 %v406
        %v498 = vunpack.c.l.b16 %v407
        %v499 = vunpack.c.l.b16 %v408
        %v500 = vunpack.c.l.b16 %v409
        %v501 = vunpack.c.l.b16 %v410
        %v502 = vunpack.c.l.b16 %v411
        %v503 = vunpack.c.l.b16 %v412
        %v504 = vunpack.c.l.b16 %v413
        %v505 = vunpack.c.l.b16 %v414
        %v506 = vunpack.c.l.b16 %v415
        %v507 = vunpack.c.l.b16 %v416
        %v508 = vunpack.c.l.b16 %v417
        %v509 = vunpack.c.l.b16 %v418
        %v510 = vunpack.c.l.b16 %v419
        %v511 = vunpack.c.l.b16 %v420
        %v512 = vunpack.c.l.b16 %v421
        %v513 = vpack.c.b16 %v482, %v481
        %v514 = vpack.c.b16 %v484, %v483
        %v515 = vpack.c.b16 %v486, %v485
        %v516 = vpack.c.b16 %v488, %v487
        %v517 = vpack.c.b16 %v490, %v489
        %v518 = vpack.c.b16 %v492, %v491
        %v519 = vpack.c.b16 %v494, %v493
        %v520 = vpack.c.b16 %v496, %v495
        %v521 = vpack.c.b16 %v498, %v497
        %v522 = vpack.c.b16 %v500, %v499
        %v523 = vpack.c.b16 %v502, %v501
        %v524 = vpack.c.b16 %v504, %v503
        %v525 = vpack.c.b16 %v506, %v505
        %v526 = vpack.c.b16 %v508, %v507
        %v527 = vpack.c.b16 %v510, %v509
        %v528 = vpack.c.b16 %v512, %v511
        %545 = vmatprep.subr.bf16.mxu0 0
        %546 = vmatpush1.bf16.msra.mxu0 %v513
        %547 = vmatprep.subr.bf16.mxu0 0
        %548 = vmatpush1.bf16.msra.mxu0 %v514
        %549 = vmatprep.subr.bf16.mxu0 0
        %550 = vmatpush1.bf16.msra.mxu0 %v515
        %551 = vmatprep.subr.bf16.mxu0 0
        %552 = vmatpush1.bf16.msra.mxu0 %v516
        %553 = vmatprep.subr.bf16.mxu0 0
        %554 = vmatpush1.bf16.msra.mxu0 %v517
        %555 = vmatprep.subr.bf16.mxu0 0
        %556 = vmatpush1.bf16.msra.mxu0 %v518
        %557 = vmatprep.subr.bf16.mxu0 0
        %558 = vmatpush1.bf16.msra.mxu0 %v519
        %559 = vmatprep.subr.bf16.mxu0 0
        %560 = vmatpush1.bf16.msra.mxu0 %v520
        %561 = vmatprep.subr.bf16.mxu0 0
        %562 = vmatpush1.bf16.msra.mxu0 %v521
        %563 = vmatprep.subr.bf16.mxu0 0
        %564 = vmatpush1.bf16.msra.mxu0 %v522
        %565 = vmatprep.subr.bf16.mxu0 0
        %566 = vmatpush1.bf16.msra.mxu0 %v523
        %567 = vmatprep.subr.bf16.mxu0 0
        %568 = vmatpush1.bf16.msra.mxu0 %v524
        %569 = vmatprep.subr.bf16.mxu0 0
        %570 = vmatpush1.bf16.msra.mxu0 %v525
        %571 = vmatprep.subr.bf16.mxu0 0
        %572 = vmatpush1.bf16.msra.mxu0 %v526
        %573 = vmatprep.subr.bf16.mxu0 0
        %574 = vmatpush1.bf16.msra.mxu0 %v527
        %575 = vmatprep.subr.bf16.mxu0 0
        %576 = vmatpush1.bf16.msra.mxu0 %v528
        %577 = vmatprep.mubr.bf16.mxu0 %v442
        %578 = vmatmul.mubr.bf16.gmra.mrb[0].mxu0 %v441
        %v579 = vpop.f32.mrb[0].mxu0
        %v580 = vadd.f32 %v427, %v579
        %v581 = vpop.f32.mrb[0].mxu0
        %v582 = vpop.f32.mrb[0].mxu0
        %v583 = vadd.f32 %v427, %v582
        %v584 = vpop.f32.mrb[0].mxu0
        %585 = vmatprep.mubr.bf16.mxu0 %v444
        %586 = vmatmul.mubr.bf16.gmra.mrb[0].mxu0 %v443
        %v587 = vpop.f32.mrb[0].mxu0
        %v588 = vadd.f32 %v427, %v587
        %v589 = vpop.f32.mrb[0].mxu0
        %v590 = vpop.f32.mrb[0].mxu0
        %v591 = vadd.f32 %v427, %v590
        %v592 = vpop.f32.mrb[0].mxu0
        %593 = vdwg.mxu0
        %v594 = vmax.f32 %v580, 0.0
        %v595 = vmax.f32 %v583, 0.0
        %v596 = vmax.f32 %v588, 0.0
        %v597 = vmax.f32 %v591, 0.0
        %vm598 = vcmask 1043456
        %v599 = vsel %vm598, %v594, 0.0
        %v600 = vrot.slane %v599, 4
        %v601 = vadd.f32 %v599, %v600
        %v602 = vrot.slane %v601, 2
        %v603 = vadd.f32 %v601, %v602
        %v604 = vrot.slane %v603, 1
        %v605 = vadd.f32 %v603, %v604
        %v607 = vrot.slane %v594, 4
        %v609 = vsel %vm598, %v607, 0.0
        %v610 = vrot.slane %v609, 4
        %v611 = vadd.f32 %v609, %v610
        %v612 = vrot.slane %v611, 2
        %v613 = vadd.f32 %v611, %v612
        %v614 = vrot.slane %v613, 1
        %v615 = vadd.f32 %v613, %v614
        %v616 = vsel %vm598, %v595, 0.0
        %v617 = vrot.slane %v616, 4
        %v618 = vadd.f32 %v616, %v617
        %v619 = vrot.slane %v618, 2
        %v620 = vadd.f32 %v618, %v619
        %v621 = vrot.slane %v620, 1
        %v622 = vadd.f32 %v620, %v621
        %v624 = vrot.slane %v595, 4
        %v626 = vsel %vm598, %v624, 0.0
        %v627 = vrot.slane %v626, 4
        %v628 = vadd.f32 %v626, %v627
        %v629 = vrot.slane %v628, 2
        %v630 = vadd.f32 %v628, %v629
        %v631 = vrot.slane %v630, 1
        %v632 = vadd.f32 %v630, %v631
        %v633 = vsel %vm598, %v596, 0.0
        %v634 = vrot.slane %v633, 4
        %v635 = vadd.f32 %v633, %v634
        %v636 = vrot.slane %v635, 2
        %v637 = vadd.f32 %v635, %v636
        %v638 = vrot.slane %v637, 1
        %v639 = vadd.f32 %v637, %v638
        %v641 = vrot.slane %v596, 4
        %v643 = vsel %vm598, %v641, 0.0
        %v644 = vrot.slane %v643, 4
        %v645 = vadd.f32 %v643, %v644
        %v646 = vrot.slane %v645, 2
        %v647 = vadd.f32 %v645, %v646
        %v648 = vrot.slane %v647, 1
        %v649 = vadd.f32 %v647, %v648
        %v650 = vsel %vm598, %v597, 0.0
        %v651 = vrot.slane %v650, 4
        %v652 = vadd.f32 %v650, %v651
        %v653 = vrot.slane %v652, 2
        %v654 = vadd.f32 %v652, %v653
        %v655 = vrot.slane %v654, 1
        %v656 = vadd.f32 %v654, %v655
        %v658 = vrot.slane %v597, 4
        %v660 = vsel %vm598, %v658, 0.0
        %v661 = vrot.slane %v660, 4
        %v662 = vadd.f32 %v660, %v661
        %v663 = vrot.slane %v662, 2
        %v664 = vadd.f32 %v662, %v663
        %v665 = vrot.slane %v664, 1
        %v666 = vadd.f32 %v664, %v665
        %vm667 = vcmask 1040384
        %v668 = vsel %vm667, %v605, %v615
        %vm669 = vcmask 1041408
        %v670 = vsel %vm669, %v668, %v622
        %vm671 = vcmask 1042432
        %v672 = vsel %vm671, %v670, %v632
        %v673 = vsel %vm598, %v672, %v639
        %vm674 = vcmask 1044480
        %v675 = vsel %vm674, %v673, %v649
        %vm676 = vcmask 1045504
        %v677 = vsel %vm676, %v675, %v656
        %vm678 = vcmask 1046528
        %v679 = vsel %vm678, %v677, %v666
        %v680 = vmul.f32 %v679, 0.25
        %s681 = smul.u32 %s26, 8
        %s682 = scalar_lea.vmem [#allocation2], %s681
        %683 = vst [vmem:[%s682] sm:$0xff] %v680
        %p684 = scmp.eq.s32.totalorder %s26, 1
        // Predicated region
        $region73: #{tpu_custom_call.1} parent=55 // pred_check
          %p685 = pneg %p684
        $region74: #{tpu_custom_call.1} parent=55 // pred_check_branch
          %687 = sbr.rel (%p685) target = $region76
        $region75: #{tpu_custom_call.1} parent=55 // pred_region
          %v688 = vld [vmem:[#allocation2] sm:$0xff]
          %v689 = vld [vmem:[#allocation2 + $0x8] sm:$0xff]
          %v690 = vpack.c.bf16 %v689, %v688
          %v691 = vld [vmem:[#allocation8] sm:$0xf]
          %v692 = vld [vmem:[#allocation8 + $0x4] sm:$0xf]
          %v693 = vld [vmem:[#allocation8 + $0x8] sm:$0xf]
          %v694 = vld [vmem:[#allocation8 + $0xc] sm:$0xf]
          %v695 = vld [vmem:[#allocation8 + $0x10] sm:$0xf]
          %v696 = vld [vmem:[#allocation8 + $0x14] sm:$0xf]
          %v697 = vld [vmem:[#allocation8 + $0x18] sm:$0xf]
          %v698 = vld [vmem:[#allocation8 + $0x1c] sm:$0xf]
          %v699 = vld [vmem:[#allocation8 + $0x20] sm:$0xf]
          %v700 = vld [vmem:[#allocation8 + $0x24] sm:$0xf]
          %v701 = vld [vmem:[#allocation8 + $0x28] sm:$0xf]
          %v702 = vld [vmem:[#allocation8 + $0x2c] sm:$0xf]
          %v703 = vld [vmem:[#allocation8 + $0x30] sm:$0xf]
          %v704 = vld [vmem:[#allocation8 + $0x34] sm:$0xf]
          %v705 = vld [vmem:[#allocation8 + $0x38] sm:$0xf]
          %v706 = vld [vmem:[#allocation8 + $0x3c] sm:$0xf]
          %v707 = vld [vmem:[%s4] sm:$0x1]
          %v709 = vlaneseq
          %v710 = vshrl.u32 %v709, 7
          %v711 = vsub.s32 0, %v710
          %v712 = vrot.slane %v707, %v711
          %v730 = vunpack.c.l.b16 %v691
          %v731 = vunpack.c.l.b16 %v692
          %v732 = vunpack.c.l.b16 %v693
          %v733 = vunpack.c.l.b16 %v694
          %v734 = vunpack.c.l.b16 %v695
          %v735 = vunpack.c.l.b16 %v696
          %v736 = vunpack.c.l.b16 %v697
          %v737 = vunpack.c.l.b16 %v698
          %v738 = vunpack.c.l.b16 %v699
          %v739 = vunpack.c.l.b16 %v700
          %v740 = vunpack.c.l.b16 %v701
          %v741 = vunpack.c.l.b16 %v702
          %v742 = vunpack.c.l.b16 %v703
          %v743 = vunpack.c.l.b16 %v704
          %v744 = vunpack.c.l.b16 %v705
          %v745 = vunpack.c.l.b16 %v706
          %v746 = vpack.c.b16 %v731, %v730
          %v747 = vpack.c.b16 %v733, %v732
          %v748 = vpack.c.b16 %v735, %v734
          %v749 = vpack.c.b16 %v737, %v736
          %v750 = vpack.c.b16 %v739, %v738
          %v751 = vpack.c.b16 %v741, %v740
          %v752 = vpack.c.b16 %v743, %v742
          %v753 = vpack.c.b16 %v745, %v744
          %762 = vmatprep.subr.bf16.mxu0 0
          %763 = vmatpush1.bf16.msra.mxu0 %v746
          %764 = vmatprep.subr.bf16.mxu0 0
          %765 = vmatpush1.bf16.msra.mxu0 %v747
          %766 = vmatprep.subr.bf16.mxu0 0
          %767 = vmatpush1.bf16.msra.mxu0 %v748
          %768 = vmatprep.subr.bf16.mxu0 0
          %769 = vmatpush1.bf16.msra.mxu0 %v749
          %770 = vmatprep.subr.bf16.mxu0 0
          %771 = vmatpush1.bf16.msra.mxu0 %v750
          %772 = vmatprep.subr.bf16.mxu0 0
          %773 = vmatpush1.bf16.msra.mxu0 %v751
          %774 = vmatprep.subr.bf16.mxu0 0
          %775 = vmatpush1.bf16.msra.mxu0 %v752
          %776 = vmatprep.subr.bf16.mxu0 0
          %777 = vmatpush1.bf16.msra.mxu0 %v753
          %778 = vmatprep.subr.bf16.mxu0 0
          %779 = vmatpush1.bf16.msra.mxu0 0
          %780 = vmatprep.subr.bf16.mxu0 0
          %781 = vmatpush1.bf16.msra.mxu0 0
          %782 = vmatprep.subr.bf16.mxu0 0
          %783 = vmatpush1.bf16.msra.mxu0 0
          %784 = vmatprep.subr.bf16.mxu0 0
          %785 = vmatpush1.bf16.msra.mxu0 0
          %786 = vmatprep.subr.bf16.mxu0 0
          %787 = vmatpush1.bf16.msra.mxu0 0
          %788 = vmatprep.subr.bf16.mxu0 0
          %789 = vmatpush1.bf16.msra.mxu0 0
          %790 = vmatprep.subr.bf16.mxu0 0
          %791 = vmatpush1.bf16.msra.mxu0 0
          %792 = vmatprep.subr.bf16.mxu0 0
          %793 = vmatpush1.bf16.msra.mxu0 0
          %794 = vmatprep.mubr.bf16.mxu0 0
          %795 = vmatmul.mubr.bf16.gmra.mrb[0].mxu0 %v690
          %v796 = vpop.f32.mrb[0].mxu0
          %v797 = vadd.f32 %v712, %v796
          %v798 = vpop.f32.mrb[0].mxu0
          %v799 = vpop.f32.mrb[0].mxu0
          %v800 = vadd.f32 %v712, %v799
          %v801 = vpop.f32.mrb[0].mxu0
          %802 = vdwg.mxu0
          %v803 = vmul.f32 %v797, 0.5
          %v804 = vmul.f32 %v800, 0.5
          %v805 = vmul.f32 %v797, 0.044715
          %v806 = vmul.f32 %v800, 0.044715
          %v807 = vmul.f32 %v805, %v797
          %v808 = vmul.f32 %v806, %v800
          %v809 = vmul.f32 %v807, %v797
          %v810 = vmul.f32 %v808, %v800
          %v811 = vadd.f32 %v797, %v809
          %v812 = vadd.f32 %v800, %v810
          %v813 = vmul.f32 %v811, 0.7978846
          %v814 = vmul.f32 %v812, 0.7978846
          %v815 = vtanh.pop %v813
          %v816 = vtanh.pop %v814
          %v817 = vadd.f32 %v815, 1.0
          %v818 = vadd.f32 %v816, 1.0
          %v819 = vmul.f32 %v803, %v817
          %v820 = vmul.f32 %v804, %v818
          %v821 = vpack.c.bf16 %v820, %v819
          %v822 = vld [vmem:[#allocation9] sm:$0xf]
          %v823 = vld [vmem:[#allocation9 + $0x4] sm:$0xf]
          %v824 = vld [vmem:[#allocation9 + $0x8] sm:$0xf]
          %v825 = vld [vmem:[#allocation9 + $0xc] sm:$0xf]
          %v826 = vld [vmem:[#allocation9 + $0x10] sm:$0xf]
          %v827 = vld [vmem:[#allocation9 + $0x14] sm:$0xf]
          %v828 = vld [vmem:[#allocation9 + $0x18] sm:$0xf]
          %v829 = vld [vmem:[#allocation9 + $0x1c] sm:$0xf]
          %v830 = vld [vmem:[#allocation9 + $0x20] sm:$0xf]
          %v831 = vld [vmem:[#allocation9 + $0x24] sm:$0xf]
          %v832 = vld [vmem:[#allocation9 + $0x28] sm:$0xf]
          %v833 = vld [vmem:[#allocation9 + $0x2c] sm:$0xf]
          %v834 = vld [vmem:[#allocation9 + $0x30] sm:$0xf]
          %v835 = vld [vmem:[#allocation9 + $0x34] sm:$0xf]
          %v836 = vld [vmem:[#allocation9 + $0x38] sm:$0xf]
          %v837 = vld [vmem:[#allocation9 + $0x3c] sm:$0xf]
          %v838 = vld [vmem:[%s6] sm:$0x1]
          %v840 = vlaneseq
          %v841 = vshrl.u32 %v840, 7
          %v842 = vsub.s32 0, %v841
          %v843 = vrot.slane %v838, %v842
          %v861 = vunpack.c.l.b16 %v822
          %v862 = vunpack.c.l.b16 %v823
          %v863 = vunpack.c.l.b16 %v824
          %v864 = vunpack.c.l.b16 %v825
          %v865 = vunpack.c.l.b16 %v826
          %v866 = vunpack.c.l.b16 %v827
          %v867 = vunpack.c.l.b16 %v828
          %v868 = vunpack.c.l.b16 %v829
          %v869 = vunpack.c.l.b16 %v830
          %v870 = vunpack.c.l.b16 %v831
          %v871 = vunpack.c.l.b16 %v832
          %v872 = vunpack.c.l.b16 %v833
          %v873 = vunpack.c.l.b16 %v834
          %v874 = vunpack.c.l.b16 %v835
          %v875 = vunpack.c.l.b16 %v836
          %v876 = vunpack.c.l.b16 %v837
          %v877 = vpack.c.b16 %v862, %v861
          %v878 = vpack.c.b16 %v864, %v863
          %v879 = vpack.c.b16 %v866, %v865
          %v880 = vpack.c.b16 %v868, %v867
          %v881 = vpack.c.b16 %v870, %v869
          %v882 = vpack.c.b16 %v872, %v871
          %v883 = vpack.c.b16 %v874, %v873
          %v884 = vpack.c.b16 %v876, %v875
          %893 = vmatprep.subr.bf16.mxu0 0
          %894 = vmatpush1.bf16.msra.mxu0 %v877
          %895 = vmatprep.subr.bf16.mxu0 0
          %896 = vmatpush1.bf16.msra.mxu0 %v878
          %897 = vmatprep.subr.bf16.mxu0 0
          %898 = vmatpush1.bf16.msra.mxu0 %v879
          %899 = vmatprep.subr.bf16.mxu0 0
          %900 = vmatpush1.bf16.msra.mxu0 %v880
          %901 = vmatprep.subr.bf16.mxu0 0
          %902 = vmatpush1.bf16.msra.mxu0 %v881
          %903 = vmatprep.subr.bf16.mxu0 0
          %904 = vmatpush1.bf16.msra.mxu0 %v882
          %905 = vmatprep.subr.bf16.mxu0 0
          %906 = vmatpush1.bf16.msra.mxu0 %v883
          %907 = vmatprep.subr.bf16.mxu0 0
          %908 = vmatpush1.bf16.msra.mxu0 %v884
          %909 = vmatprep.subr.bf16.mxu0 0
          %910 = vmatpush1.bf16.msra.mxu0 0
          %911 = vmatprep.subr.bf16.mxu0 0
          %912 = vmatpush1.bf16.msra.mxu0 0
          %913 = vmatprep.subr.bf16.mxu0 0
          %914 = vmatpush1.bf16.msra.mxu0 0
          %915 = vmatprep.subr.bf16.mxu0 0
          %916 = vmatpush1.bf16.msra.mxu0 0
          %917 = vmatprep.subr.bf16.mxu0 0
          %918 = vmatpush1.bf16.msra.mxu0 0
          %919 = vmatprep.subr.bf16.mxu0 0
          %920 = vmatpush1.bf16.msra.mxu0 0
          %921 = vmatprep.subr.bf16.mxu0 0
          %922 = vmatpush1.bf16.msra.mxu0 0
          %923 = vmatprep.subr.bf16.mxu0 0
          %924 = vmatpush1.bf16.msra.mxu0 0
          %925 = vmatprep.mubr.bf16.mxu0 0
          %926 = vmatmul.mubr.bf16.gmra.mrb[0].mxu0 %v821
          %v927 = vpop.f32.mrb[0].mxu0
          %v928 = vadd.f32 %v843, %v927
          %v929 = vpop.f32.mrb[0].mxu0
          %v930 = vpop.f32.mrb[0].mxu0
          %v931 = vadd.f32 %v843, %v930
          %v932 = vpop.f32.mrb[0].mxu0
          %933 = vdwg.mxu0
          %v934 = vadd.f32 %v928, %v797
          %v935 = vadd.f32 %v931, %v800
          %936 = vadd.xlane.f32.xlu0 %v934
          %v937 = vpop.xlane.xlu0 %936
          %938 = vadd.xlane.f32.xlu0 %v935
          %v939 = vpop.xlane.xlu0 %938
          %v940 = vrcp.pop 128.0
          %v941 = vmul.f32 %v937, %v940
          %v942 = vmul.f32 %v939, %v940
          %v943 = vsub.f32 %v934, %v941
          %v944 = vsub.f32 %v935, %v942
          %v945 = vmul.f32 %v943, %v943
          %v946 = vmul.f32 %v944, %v944
          %947 = vadd.xlane.f32.xlu0 %v945
          %v948 = vpop.xlane.xlu0 %947
          %949 = vadd.xlane.f32.xlu0 %v946
          %v950 = vpop.xlane.xlu0 %949
          %v951 = vmul.f32 %v948, %v940
          %v952 = vmul.f32 %v950, %v940
          %v953 = vadd.f32 %v951, 1e-05
          %v954 = vadd.f32 %v952, 1e-05
          %v955 = vrsqrt.pop %v953
          %v956 = vrsqrt.pop %v954
          %v957 = vmul.f32 %v943, %v955
          %v958 = vmul.f32 %v944, %v956
          %v959 = vld [vmem:[%s7] sm:$0x1]
          %v961 = vlaneseq
          %v962 = vshrl.u32 %v961, 7
          %v963 = vsub.s32 0, %v962
          %v964 = vrot.slane %v959, %v963
          %v966 = vmul.f32 %v957, %v964
          %v967 = vmul.f32 %v958, %v964
          %v968 = vld [vmem:[%s8] sm:$0x1]
          %v970 = vlaneseq
          %v971 = vshrl.u32 %v970, 7
          %v972 = vsub.s32 0, %v971
          %v973 = vrot.slane %v968, %v972
          %v975 = vadd.f32 %v966, %v973
          %v976 = vadd.f32 %v967, %v973
          %v977 = vpack.c.bf16 %v975, %v975
          %v978 = vpack.c.bf16 %v976, %v976
          %979 = vmatprep.subr.bf16.mxu0 0
          %980 = vmatpush1.bf16.xpose.msra.mxu0 %v977
          %981 = vmatprep.subr.bf16.mxu0 0
          %982 = vmatpush1.bf16.xpose.msra.mxu0 0
          %983 = vmatprep.subr.bf16.mxu0 0
          %984 = vmatpush1.bf16.xpose.msra.mxu0 0
          %985 = vmatprep.subr.bf16.mxu0 0
          %986 = vmatpush1.bf16.xpose.msra.mxu0 0
          %987 = vmatprep.subr.bf16.mxu0 0
          %988 = vmatpush1.bf16.xpose.msra.mxu0 0
          %989 = vmatprep.subr.bf16.mxu0 0
          %990 = vmatpush1.bf16.xpose.msra.mxu0 0
          %991 = vmatprep.subr.bf16.mxu0 0
          %992 = vmatpush1.bf16.xpose.msra.mxu0 0
          %993 = vmatprep.subr.bf16.mxu0 0
          %994 = vmatpush1.bf16.xpose.msra.mxu0 0
          %995 = vmatprep.subr.bf16.mxu0 0
          %996 = vmatpush1.bf16.xpose.msra.mxu0 0
          %997 = vmatprep.subr.bf16.mxu0 0
          %998 = vmatpush1.bf16.xpose.msra.mxu0 0
          %999 = vmatprep.subr.bf16.mxu0 0
          %1000 = vmatpush1.bf16.xpose.msra.mxu0 0
          %1001 = vmatprep.subr.bf16.mxu0 0
          %1002 = vmatpush1.bf16.xpose.msra.mxu0 0
          %1003 = vmatprep.subr.bf16.mxu0 0
          %1004 = vmatpush1.bf16.xpose.msra.mxu0 0
          %1005 = vmatprep.subr.bf16.mxu0 0
          %1006 = vmatpush1.bf16.xpose.msra.mxu0 0
          %1007 = vmatprep.subr.bf16.mxu0 0
          %1008 = vmatpush1.bf16.xpose.msra.mxu0 0
          %1009 = vmatprep.subr.bf16.mxu0 0
          %1010 = vmatpush1.bf16.xpose.msra.mxu0 0
          %1011 = vmatprep.mubr.bf16.mxu0 0
          %1012 = vmatmul.mubr.bf16.gmra.mrb[0].mxu0 %v978
          %v1013 = vpop.f32.mrb[0].mxu0
          %v1014 = vadd.f32 0.0, %v1013
          %v1015 = vpop.f32.mrb[0].mxu0
          %v1016 = vpop.f32.mrb[0].mxu0
          %v1017 = vpop.f32.mrb[0].mxu0
          %1018 = vdwg.mxu0
          %1019 = vmatprep.subr.bf16.mxu0 0
          %1020 = vmatpush1.bf16.xpose.msra.mxu0 %v978
          %1021 = vmatprep.subr.bf16.mxu0 0
          %1022 = vmatpush1.bf16.xpose.msra.mxu0 0
          %1023 = vmatprep.subr.bf16.mxu0 0
          %1024 = vmatpush1.bf16.xpose.msra.mxu0 0
          %1025 = vmatprep.subr.bf16.mxu0 0
          %1026 = vmatpush1.bf16.xpose.msra.mxu0 0
          %1027 = vmatprep.subr.bf16.mxu0 0
          %1028 = vmatpush1.bf16.xpose.msra.mxu0 0
          %1029 = vmatprep.subr.bf16.mxu0 0
          %1030 = vmatpush1.bf16.xpose.msra.mxu0 0
          %1031 = vmatprep.subr.bf16.mxu0 0
          %1032 = vmatpush1.bf16.xpose.msra.mxu0 0
          %1033 = vmatprep.subr.bf16.mxu0 0
          %1034 = vmatpush1.bf16.xpose.msra.mxu0 0
          %1035 = vmatprep.subr.bf16.mxu0 0
          %1036 = vmatpush1.bf16.xpose.msra.mxu0 0
          %1037 = vmatprep.subr.bf16.mxu0 0
          %1038 = vmatpush1.bf16.xpose.msra.mxu0 0
          %1039 = vmatprep.subr.bf16.mxu0 0
          %1040 = vmatpush1.bf16.xpose.msra.mxu0 0
          %1041 = vmatprep.subr.bf16.mxu0 0
          %1042 = vmatpush1.bf16.xpose.msra.mxu0 0
          %1043 = vmatprep.subr.bf16.mxu0 0
          %1044 = vmatpush1.bf16.xpose.msra.mxu0 0
          %1045 = vmatprep.subr.bf16.mxu0 0
          %1046 = vmatpush1.bf16.xpose.msra.mxu0 0
          %1047 = vmatprep.subr.bf16.mxu0 0
          %1048 = vmatpush1.bf16.xpose.msra.mxu0 0
          %1049 = vmatprep.subr.bf16.mxu0 0
          %1050 = vmatpush1.bf16.xpose.msra.mxu0 0
          %1051 = vmatprep.mubr.bf16.mxu0 0
          %1052 = vmatmul.mubr.bf16.gmra.mrb[0].mxu0 %v978
          %v1053 = vpop.f32.mrb[0].mxu0
          %v1054 = vadd.f32 0.0, %v1053
          %v1055 = vpop.f32.mrb[0].mxu0
          %v1056 = vpop.f32.mrb[0].mxu0
          %v1057 = vpop.f32.mrb[0].mxu0
          %1058 = vdwg.mxu0
          %1059 = vmatprep.subr.bf16.mxu0 0
          %1060 = vmatpush1.bf16.xpose.msra.mxu0 %v977
          %1061 = vmatprep.subr.bf16.mxu0 0
          %1062 = vmatpush1.bf16.xpose.msra.mxu0 0
          %1063 = vmatprep.subr.bf16.mxu0 0
          %1064 = vmatpush1.bf16.xpose.msra.mxu0 0
          %1065 = vmatprep.subr.bf16.mxu0 0
          %1066 = vmatpush1.bf16.xpose.msra.mxu0 0
          %1067 = vmatprep.subr.bf16.mxu0 0
          %1068 = vmatpush1.bf16.xpose.msra.mxu0 0
          %1069 = vmatprep.subr.bf16.mxu0 0
          %1070 = vmatpush1.bf16.xpose.msra.mxu0 0
          %1071 = vmatprep.subr.bf16.mxu0 0
          %1072 = vmatpush1.bf16.xpose.msra.mxu0 0
          %1073 = vmatprep.subr.bf16.mxu0 0
          %1074 = vmatpush1.bf16.xpose.msra.mxu0 0
          %1075 = vmatprep.subr.bf16.mxu0 0
          %1076 = vmatpush1.bf16.xpose.msra.mxu0 0
          %1077 = vmatprep.subr.bf16.mxu0 0
          %1078 = vmatpush1.bf16.xpose.msra.mxu0 0
          %1079 = vmatprep.subr.bf16.mxu0 0
          %1080 = vmatpush1.bf16.xpose.msra.mxu0 0
          %1081 = vmatprep.subr.bf16.mxu0 0
          %1082 = vmatpush1.bf16.xpose.msra.mxu0 0
          %1083 = vmatprep.subr.bf16.mxu0 0
          %1084 = vmatpush1.bf16.xpose.msra.mxu0 0
          %1085 = vmatprep.subr.bf16.mxu0 0
          %1086 = vmatpush1.bf16.xpose.msra.mxu0 0
          %1087 = vmatprep.subr.bf16.mxu0 0
          %1088 = vmatpush1.bf16.xpose.msra.mxu0 0
          %1089 = vmatprep.subr.bf16.mxu0 0
          %1090 = vmatpush1.bf16.xpose.msra.mxu0 0
          %1091 = vmatprep.mubr.bf16.mxu0 0
          %1092 = vmatmul.mubr.bf16.gmra.mrb[0].mxu0 %v977
          %v1093 = vpop.f32.mrb[0].mxu0
          %v1094 = vadd.f32 %v1054, %v1093
          %v1095 = vpop.f32.mrb[0].mxu0
          %v1096 = vpop.f32.mrb[0].mxu0
          %v1097 = vpop.f32.mrb[0].mxu0
          %1098 = vdwg.mxu0
          %v1099 = vmul.f32 %v1094, 0.5
          %vm1100 = vcmask 64512
          %v1101 = vsel %vm1100, %v1099, -inf
          %1102 = vmax.xlane.f32.xlu0 %v1101
          %v1103 = vpop.xlane.xlu0 %1102
          %v1104 = vsub.f32 %v1099, %v1103
          %v1105 = vmul.f32 %v1104, 1.442695
          %v1106 = vpow.pop %v1105
          %v1107 = vsel %vm1100, %v1106, 0.0
          %1108 = vadd.xlane.f32.xlu0 %v1107
          %v1109 = vpop.xlane.xlu0 %1108
          %v1110 = vrcp.pop %v1109
          %v1111 = vmul.f32 %v1106, %v1110
          %v1112 = vsel %vm1100, %v1014, -inf
          %1113 = vmax.xlane.f32.xlu0 %v1112
          %v1114 = vpop.xlane.xlu0 %1113
          %v1115 = vsub.f32 %v1014, %v1114
          %v1116 = vmul.f32 %v1115, 1.442695
          %v1117 = vpow.pop %v1116
          %v1118 = vsel %vm1100, %v1117, 0.0
          %1119 = vadd.xlane.f32.xlu0 %v1118
          %v1120 = vpop.xlane.xlu0 %1119
          %v1121 = vlog2.pop %v1120
          %v1122 = vmul.f32 %v1121, 0.6931472
          %v1123 = vadd.f32 %v1114, %v1122
          %v1124 = vrot.slane %v1112, 4
          %v1125 = vmax.f32 %v1112, %v1124
          %v1126 = vrot.slane %v1125, 2
          %v1127 = vmax.f32 %v1125, %v1126
          %v1128 = vrot.slane %v1127, 1
          %v1129 = vmax.f32 %v1127, %v1128
          %v1130 = vsub.f32 %v1014, %v1129
          %v1131 = vmul.f32 %v1130, 1.442695
          %v1132 = vpow.pop %v1131
          %v1133 = vsel %vm1100, %v1132, 0.0
          %v1134 = vrot.slane %v1133, 4
          %v1135 = vadd.f32 %v1133, %v1134
          %v1136 = vrot.slane %v1135, 2
          %v1137 = vadd.f32 %v1135, %v1136
          %v1138 = vrot.slane %v1137, 1
          %v1139 = vadd.f32 %v1137, %v1138
          %v1140 = vlog2.pop %v1139
          %v1141 = vmul.f32 %v1140, 0.6931472
          %v1142 = vadd.f32 %v1129, %v1141
          %v1143 = vmul.f32 %v1111, %v1014
          %v1144 = vsel %vm1100, %v1143, 0.0
          %1145 = vadd.xlane.f32.xlu0 %v1144
          %v1146 = vpop.xlane.xlu0 %1145
          %v1147 = vrot.slane %v1146, 4
          %v1148 = vadd.f32 %v1146, %v1147
          %v1149 = vrot.slane %v1148, 2
          %v1150 = vadd.f32 %v1148, %v1149
          %v1151 = vrot.slane %v1150, 1
          %v1152 = vadd.f32 %v1150, %v1151
          %v1153 = vadd.f32 %v1123, 0.0
          %v1154 = vrot.slane %v1153, 4
          %v1155 = vadd.f32 %v1153, %v1154
          %v1156 = vrot.slane %v1155, 2
          %v1157 = vadd.f32 %v1155, %v1156
          %v1158 = vrot.slane %v1157, 1
          %v1159 = vadd.f32 %v1157, %v1158
          %v1160 = vsel %vm1100, %v1111, 0.0
          %v1161 = vrot.slane %v1160, 4
          %v1162 = vadd.f32 %v1160, %v1161
          %v1163 = vrot.slane %v1162, 2
          %v1164 = vadd.f32 %v1162, %v1163
          %v1165 = vrot.slane %v1164, 1
          %v1166 = vadd.f32 %v1164, %v1165
          %v1167 = vmul.f32 %v1166, %v1142
          %v1168 = vsel %vm1100, %v1167, 0.0
          %1169 = vadd.xlane.f32.xlu0 %v1168
          %v1170 = vpop.xlane.xlu0 %1169
          %v1171 = vadd.f32 %v1170, 0.0
          %v1172 = vmul.f32 %v1152, -2.0
          %v1173 = vadd.f32 %v1172, %v1159
          %v1174 = vadd.f32 %v1173, %v1171
          %v1175 = vrcp.pop 16.0
          %v1176 = vmul.f32 %v1174, %v1175
          %vm1177 = vcmask 0
          %1178 = vst.msk [vmem:[#allocation11] sm:$0x1] %vm1177, %v1176
        $region76: #{tpu_custom_call.1} parent=55 // pred_fallthru
          _
        // Predicated region
        $region77: #{tpu_custom_call.1} parent=55 // pred_check
          %p1179 = pneg %p233
        $region78: #{tpu_custom_call.1} parent=55 // pred_check_branch
          %1181 = sbr.rel (%p1179) target = $region80
        $region79: #{tpu_custom_call.1} parent=55 // pred_region
          %s1183 = ssub.s32 16, 16
          %1184 = vsyncadd [#allocation5], %s1183
          %s1186 = sshll.u32 [#allocation11], 4
          %s1187 = int_to_ptr.vmem [resolvable:$true] %s1186
          %1189 = dma.vmem_to_hbm [thread:$0]  %s1187, 16, %s9, [#allocation5]
        $region80: #{tpu_custom_call.1} parent=55 // pred_fallthru
          _
        // Predicated region
        $region81: #{tpu_custom_call.1} parent=55 // pred_check
          %p1190 = pneg %p233
        $region82: #{tpu_custom_call.1} parent=55 // pred_check_branch
          %1192 = sbr.rel (%p1190) target = $region84
        $region83: #{tpu_custom_call.1} parent=55 // pred_region
          %1193 = dma.done [#allocation5], 16
        $region84: #{tpu_custom_call.1} parent=55 // pred_fallthru
          _
      $region56: #{tpu_custom_call.1} parent=5 // pred_fallthru
        _
      %p1194 = scmp.le.s32.totalorder 2, %s21
      // Predicated region
      $region85: #{tpu_custom_call.1} parent=5 // pred_check
        %p1195 = pneg %p1194
      $region86: #{tpu_custom_call.1} parent=5 // pred_check_branch
        %1197 = sbr.rel (%p1195) target = $region88
      $region87: #{tpu_custom_call.1} parent=5 // pred_region
        %s1198 = ssub.s32 %s21, 2
      $region88: #{tpu_custom_call.1} parent=5 // pred_fallthru
        _
    $region6: #{tpu_custom_call.1} parent=1 // loop_footer
      %s25 = sadd.s32 1, %s21
    $region7: #{tpu_custom_call.1} parent=1 // loop_footer_branch
      %20 = sbr.rel target = $region3
    $region8: #{tpu_custom_call.1} parent=1 // loop_exit
      _
    %1199 = vsyncpa [#allocation4], 1
    %s1200 = scalar_lea.sflag [#allocation4], 1
    %1201 = vsyncpa %s1200, 1
    %1202 = vsyncpa [#allocation7], 1
    %1203 = vsyncpa [#allocation10], 1
    %1204 = vsyncpa [#allocation5], 1
    %s1205 = scalar_lea.sflag [#allocation5], 1
    %1206 = vsyncpa %s1205, 1

</llo_original>
